<compile_context>
chip_gen: v5e
topology: v5e:2x2
jax: 0.10.0
libtpu: 0.0.40
codegen_flags: <defaults>
</compile_context>

<pallas_src>
import functools

import jax
import jax.numpy as jnp
from jax.experimental import pallas as pl
from jax.experimental.pallas import tpu as pltpu


# ----------------------------------------------------------------------------
# helpers
# ----------------------------------------------------------------------------
def _pick_tile(m, candidates=(2048, 1024, 512, 256, 128, 64, 32, 16, 8)):
    """Largest row-tile that divides M and gives >= 2 grid steps (pipelining)."""
    for t in candidates:
        if m % t == 0 and m // t >= 2:
            return t
    return m


# ----------------------------------------------------------------------------
# Kernel 1: fused stem conv (src + noise, single MXU push) + noise injection
# ----------------------------------------------------------------------------
def _stem_inject_kernel(x_ref, mask_ref, w_ref, b_ref, o_ref):
    x2 = x_ref[...]                                       # (2, tm, K) bf16  [src ; noise]
    tm = x2.shape[1]
    x = x2.reshape(2 * tm, x2.shape[2])                   # one (2*tm, K) matmul:
    y = jnp.dot(x, w_ref[...],                            # stem weights pushed once
                preferred_element_type=jnp.float32) + b_ref[...]
    y = jnp.maximum(y, 0.0)
    s = y[:tm]                                            # source features
    nz = y[tm:]                                           # noise features
    m = mask_ref[...]                                     # (tm, 1) f32, broadcasts over C
    o_ref[...] = (m * nz + (1.0 - m) * s).astype(o_ref.dtype)


def stem_inject(stacked_cols, mask, w, b):
    """stacked_cols: (2, M, K) bf16 [src;noise], mask: (M,1) f32, w: (K,C) bf16 -> (M,C) bf16."""
    g, M, K = stacked_cols.shape
    assert g == 2
    Kw, C = w.shape
    assert K == Kw
    tm = _pick_tile(M)
    grid = (M // tm,)
    flops = 2 * (2 * M) * K * C
    bytes_accessed = (2 * M * K + K * C + M * C) * 2 + M * 4 + C * 4
    # Per-tile VMEM footprint even at tm=2048 is <2 MiB double-buffered, so the
    # default scoped VMEM limit is plenty (no vmem_limit_bytes override needed).
    return pl.pallas_call(
        _stem_inject_kernel,
        out_shape=jax.ShapeDtypeStruct((M, C), jnp.bfloat16),
        grid=grid,
        in_specs=[
            pl.BlockSpec((2, tm, K), lambda i: (0, i, 0)),
            pl.BlockSpec((tm, 1), lambda i: (i, 0)),
            pl.BlockSpec((K, C), lambda i: (0, 0)),        # weights resident across tiles
            pl.BlockSpec((1, C), lambda i: (0, 0)),
        ],
        out_specs=pl.BlockSpec((tm, C), lambda i: (i, 0)),
        compiler_params=pltpu.CompilerParams(dimension_semantics=("parallel",)),
        cost_estimate=pl.CostEstimate(
            flops=flops, transcendentals=0, bytes_accessed=bytes_accessed),
    )(stacked_cols, mask, w, b.reshape(1, C))


# ----------------------------------------------------------------------------
# Kernel 2: fused RPN 3x3 conv (+ReLU) + lane-dense 1x1 heads + BCE loss
# ----------------------------------------------------------------------------
def _rpn_head_loss_kernel(fmap_ref, mask_ref, rpn_w_ref, rpn_b_ref,
                          head_w_ref, head_b_ref,
                          heads_ref, loss_ref, pad_ref, *, hp, wp, num_anchors):
    # fmap_ref : (1, hp, wp, C) bf16  -- UNPADDED feature map, one image
    # mask_ref : (1, hp*wp, 1)  f32   -- injected-noise mask at feature res.
    # rpn_w_ref: (9, C, C) bf16 ; rpn_b_ref: (1, C) f32
    # head_w_ref: (C, 128) bf16 ; head_b_ref: (1, 128) f32  (lane-dense heads)
    # pad_ref  : VMEM scratch (hp+2, wp+2, C) bf16 -- halo padding done on-chip
    c = fmap_ref.shape[-1]

    # Halo zero-padding in VMEM (no jnp.pad HBM round trip in the wrapper).
    # Re-zeroed every grid step so it stays correct under megacore sharding.
    pad_ref[...] = jnp.zeros_like(pad_ref)
    pad_ref[1:hp + 1, 1:wp + 1, :] = fmap_ref[0]

    acc = jnp.zeros((hp * wp, c), jnp.float32)
    # 3x3 conv as 9 accumulated MXU matmuls.  Only 3 width-shifted loads are
    # needed (one per dx); the 3 row shifts per dx are free leading-dim slices
    # and the (hp,wp)->(hp*wp) merge is layout-preserving when wp % 8 == 0.
    for dx in range(3):
        col = pad_ref[:, dx:dx + wp, :]                   # (hp+2, wp, c)
        for dy in range(3):
            x = col[dy:dy + hp].reshape(hp * wp, c)
            acc = acc + jnp.dot(x, rpn_w_ref[3 * dy + dx],
                                preferred_element_type=jnp.float32)
    hidden = jnp.maximum(acc + rpn_b_ref[...], 0.0).astype(head_w_ref.dtype)

    # fused objectness + box-delta 1x1 heads; rpn_hidden never leaves VMEM.
    heads = jnp.dot(hidden, head_w_ref[...],
                    preferred_element_type=jnp.float32) + head_b_ref[...]
    heads_ref[0] = heads.astype(heads_ref.dtype)          # bf16 writeback (lane-dense 128)

    # fused sigmoid-BCE of the objectness lanes vs. the injected-noise mask;
    # logits stay in VMEM, only a per-image f32 partial sum goes to HBM.
    z = mask_ref[0]                                        # (hp*wp, 1)
    lane = jax.lax.broadcasted_iota(jnp.int32, heads.shape, 1)
    valid = (lane < num_anchors).astype(jnp.float32)       # only objectness lanes count
    bce = jnp.maximum(heads, 0.0) - heads * z + jnp.log1p(jnp.exp(-jnp.abs(heads)))
    loss_ref[...] = jnp.zeros((1, 1, 1), jnp.float32) + jnp.sum(bce * valid)


def rpn_head_loss(fmap, mask_loc, rpn_w, rpn_b, head_w, head_b, *, num_anchors):
    """fmap: (N,hp,wp,C) bf16, mask_loc: (N,hp*wp,1) f32 ->
       heads (N,hp*wp,128) bf16, per-image loss partials (N,1,1) f32."""
    n, hp, wp, c = fmap.shape
    head_out = head_w.shape[-1]
    kernel = functools.partial(_rpn_head_loss_kernel, hp=hp, wp=wp,
                               num_anchors=num_anchors)
    flops = n * (2 * 9 * hp * wp * c * c + 2 * hp * wp * c * head_out)
    transc = 2 * n * hp * wp * head_out                    # exp + log1p per logit
    bytes_accessed = (fmap.size + rpn_w.size + head_w.size
                      + n * hp * wp * head_out) * 2 + mask_loc.size * 4 + n * 4
    return pl.pallas_call(
        kernel,
        out_shape=(
            jax.ShapeDtypeStruct((n, hp * wp, head_out), jnp.bfloat16),
            jax.ShapeDtypeStruct((n, 1, 1), jnp.float32),
        ),
        grid=(n,),
        in_specs=[
            pl.BlockSpec((1, hp, wp, c), lambda i: (i, 0, 0, 0)),
            pl.BlockSpec((1, hp * wp, 1), lambda i: (i, 0, 0)),
            pl.BlockSpec((9, c, c), lambda i: (0, 0, 0)),
            pl.BlockSpec((1, c), lambda i: (0, 0)),
            pl.BlockSpec((c, head_out), lambda i: (0, 0)),
            pl.BlockSpec((1, head_out), lambda i: (0, 0)),
        ],
        out_specs=(
            pl.BlockSpec((1, hp * wp, head_out), lambda i: (i, 0, 0)),
            pl.BlockSpec((1, 1, 1), lambda i: (i, 0, 0)),
        ),
        scratch_shapes=[pltpu.VMEM((hp + 2, wp + 2, c), fmap.dtype)],
        compiler_params=pltpu.CompilerParams(dimension_semantics=("parallel",)),
        cost_estimate=pl.CostEstimate(flops=flops, transcendentals=transc,
                                      bytes_accessed=bytes_accessed),
    )(fmap, mask_loc, rpn_w, rpn_b.reshape(1, c), head_w,
      head_b.reshape(1, head_out))


# ----------------------------------------------------------------------------
# Glue (plain JAX, fused under jit): layout conversion, patch extraction, params
# ----------------------------------------------------------------------------
def nchw_to_nhwc(x):
    return jnp.transpose(x, (0, 2, 3, 1))


def patchify_stacked(x, ps):
    """Non-overlapping patch extraction of a (2, N, H, W, C) stacked src/noise pair."""
    g, n, h, w, c = x.shape
    hp, wp = h // ps, w // ps
    x = x.reshape(g, n, hp, ps, wp, ps, c)
    x = jnp.transpose(x, (0, 1, 2, 4, 3, 5, 6))            # (g, N, Hp, Wp, ps, ps, C)
    return x.reshape(g, n * hp * wp, ps * ps * c), (n, hp, wp)


def init_params(c_in=3, patch=4, feat=128, num_anchors=3, head_out=128, scale=0.05):
    """Deterministic synthetic parameters; weights stored bf16, biases f32.

    feat=128 keeps every matmul operand/result 128-lane aligned (MXU/vst dense).
    The two 1x1 heads are concatenated into one lane-dense (feat, 128) weight:
    [objectness A | box deltas 4A | zero pad].
    """
    a = num_anchors
    ks = jax.random.split(jax.random.PRNGKey(1234), 8)
    stem_w = scale * jax.random.normal(ks[0], (patch * patch * c_in, feat), jnp.float32)
    stem_b = scale * jax.random.normal(ks[1], (feat,), jnp.float32)
    rpn_w = scale * jax.random.normal(ks[2], (9, feat, feat), jnp.float32)
    rpn_b = scale * jax.random.normal(ks[3], (feat,), jnp.float32)
    obj_w = scale * jax.random.normal(ks[4], (feat, a), jnp.float32)
    obj_b = scale * jax.random.normal(ks[5], (a,), jnp.float32)
    box_w = scale * jax.random.normal(ks[6], (feat, 4 * a), jnp.float32)
    box_b = scale * jax.random.normal(ks[7], (4 * a,), jnp.float32)
    head_w = jnp.zeros((feat, head_out), jnp.float32)
    head_w = head_w.at[:, :5 * a].set(jnp.concatenate([obj_w, box_w], axis=-1))
    head_b = jnp.zeros((head_out,), jnp.float32)
    head_b = head_b.at[:5 * a].set(jnp.concatenate([obj_b, box_b], axis=-1))
    return {
        "stem_w": stem_w.astype(jnp.bfloat16), "stem_b": stem_b,
        "rpn_w": rpn_w.astype(jnp.bfloat16), "rpn_b": rpn_b,
        "head_w": head_w.astype(jnp.bfloat16), "head_b": head_b,
    }


def inod_rcnn_forward(source_nchw, noise_nchw, params, mask_key, *,
                      patch=4, num_anchors=3):
    """Training-mode forward: returns the losses dict (INoD pre-training)."""
    # preprocess_image: images already same-shape & size-divisible -> just batch.
    src = nchw_to_nhwc(source_nchw).astype(jnp.float32)
    noi = nchw_to_nhwc(noise_nchw).astype(jnp.float32)

    # Stack src+noise so the stem kernel pushes its weights once per (2*tm, K) tile.
    stacked = jnp.stack([src, noi], axis=0)                 # (2, N, H, W, Cin)
    cols, (n, hp, wp) = patchify_stacked(stacked, patch)    # (2, M, K)
    feat_c = params["stem_w"].shape[-1]
    m_rows = n * hp * wp

    # retrieve_noise_mask: binary injection mask at feature resolution
    # (fresh key per call -- the caller controls it, unlike a fixed constant).
    mask_final = jax.random.bernoulli(mask_key, p=0.3, shape=(n, hp, wp))
    mask_flat = mask_final.astype(jnp.float32).reshape(m_rows, 1)

    # backbone((source, noise, mask)): fused stem conv + noise injection.
    fused = stem_inject(cols.astype(jnp.bfloat16), mask_flat,
                        params["stem_w"], params["stem_b"])  # (M, C) bf16
    fused_map = fused.reshape(n, hp, wp, feat_c)             # unpadded: halo done in-kernel

    # proposal_generator (RPN head) + proposal loss, fully fused:
    # 3x3 conv + ReLU + 1x1 heads + sigmoid-BCE(objectness, injected-noise mask).
    heads, loss_parts = rpn_head_loss(
        fused_map, mask_flat.reshape(n, hp * wp, 1),
        params["rpn_w"], params["rpn_b"], params["head_w"], params["head_b"],
        num_anchors=num_anchors)
    del heads  # box-delta lanes are produced (bf16) for downstream use

    loss_rpn_cls = jnp.sum(loss_parts) / float(m_rows * num_anchors)

    # TODO(synk): RPN box-regression loss, proposal NMS/top-k, RoIAlign and the
    # ROI-head losses require anchor matching / sorting / dynamic gathers with
    # no clean Pallas equivalent here; omitted rather than faked.
    return {"loss_rpn_cls": loss_rpn_cls}


if __name__ == "__main__":
    key = jax.random.PRNGKey(0)
    k_src, k_noi, k_mask = jax.random.split(key, 3)
    N, C, H, W = 2, 3, 32, 32                              # small NCHW image batch
    source_image = jax.random.normal(k_src, (N, C, H, W), jnp.float32)
    noise_image = jax.random.normal(k_noi, (N, C, H, W), jnp.float32)

    params = init_params(c_in=C, patch=4, feat=128, num_anchors=3)
    fwd = jax.jit(functools.partial(inod_rcnn_forward, patch=4, num_anchors=3))
    losses = fwd(source_image, noise_image, params, k_mask)
    jax.block_until_ready(losses["loss_rpn_cls"])
    assert jnp.isfinite(losses["loss_rpn_cls"])
    print("KERNEL_OK")
</pallas_src>

<mosaic_0001>
module attributes {stable_mosaic.version = 11 : i64} {
  func.func @_stem_inject_kernel(%arg0: i32, %arg1: memref<2x64x48xbf16, #tpu.memory_space<vmem>>, %arg2: memref<64x1xf32, #tpu.memory_space<vmem>>, %arg3: memref<48x128xbf16, #tpu.memory_space<vmem>>, %arg4: memref<1x128xf32, #tpu.memory_space<vmem>>, %arg5: memref<64x128xbf16, #tpu.memory_space<vmem>>) attributes {dimension_semantics = [#tpu.dimension_semantics<parallel>], iteration_bounds = array<i64: 2>, scalar_prefetch = 0 : i64, scratch_operands = 0 : i64, tpu.core_type = #tpu.core_type<tc>, window_params = [{transform_indices = @transform_0, window_bounds = array<i64: 2, 64, 48>}, {transform_indices = @transform_1, window_bounds = array<i64: 64, 1>}, {pipeline_mode = #tpu.pipeline_mode<synchronous>, transform_indices = @transform_2, window_bounds = array<i64: 48, 128>}, {pipeline_mode = #tpu.pipeline_mode<synchronous>, transform_indices = @transform_3, window_bounds = array<i64: 1, 128>}, {transform_indices = @transform_4, window_bounds = array<i64: 64, 128>}]} {
    %c0 = arith.constant 0 : index
    %c0_0 = arith.constant 0 : index
    %c0_1 = arith.constant 0 : index
    %0 = vector.load %arg1[%c0, %c0_0, %c0_1] : memref<2x64x48xbf16, #tpu.memory_space<vmem>>, vector<2x64x48xbf16>
    %1 = vector.shape_cast %0 : vector<2x64x48xbf16> to vector<128x48xbf16>
    %c0_2 = arith.constant 0 : index
    %c0_3 = arith.constant 0 : index
    %2 = vector.load %arg3[%c0_2, %c0_3] : memref<48x128xbf16, #tpu.memory_space<vmem>>, vector<48x128xbf16>
    %cst = arith.constant dense<0.000000e+00> : vector<128x128xf32>
    %3 = tpu.matmul %1, %2, %cst {dimension_numbers = #tpu.dot_dimension_numbers<[1], [0], [0], [1], [0, 0, 1, 1], [], []>} : vector<128x48xbf16>, vector<48x128xbf16>, vector<128x128xf32> -> vector<128x128xf32>
    %c0_4 = arith.constant 0 : index
    %c0_5 = arith.constant 0 : index
    %4 = vector.load %arg4[%c0_4, %c0_5] : memref<1x128xf32, #tpu.memory_space<vmem>>, vector<1x128xf32>
    %5 = vector.broadcast %4 : vector<1x128xf32> to vector<128x128xf32>
    %6 = arith.addf %3, %5 : vector<128x128xf32>
    %cst_6 = arith.constant 0.000000e+00 : f32
    %7 = vector.broadcast %cst_6 : f32 to vector<128x128xf32>
    %8 = arith.maximumf %6, %7 : vector<128x128xf32>
    %9 = vector.extract_strided_slice %8 {offsets = [0, 0], sizes = [64, 128], strides = [1, 1]} : vector<128x128xf32> to vector<64x128xf32>
    %10 = vector.extract_strided_slice %8 {offsets = [64, 0], sizes = [64, 128], strides = [1, 1]} : vector<128x128xf32> to vector<64x128xf32>
    %c0_7 = arith.constant 0 : index
    %c0_8 = arith.constant 0 : index
    %11 = vector.load %arg2[%c0_7, %c0_8] : memref<64x1xf32, #tpu.memory_space<vmem>>, vector<64x1xf32>
    %12 = vector.broadcast %11 : vector<64x1xf32> to vector<64x128xf32>
    %13 = arith.mulf %12, %10 : vector<64x128xf32>
    %cst_9 = arith.constant 1.000000e+00 : f32
    %14 = vector.broadcast %cst_9 : f32 to vector<64x1xf32>
    %15 = arith.subf %14, %11 : vector<64x1xf32>
    %16 = vector.broadcast %15 : vector<64x1xf32> to vector<64x128xf32>
    %17 = arith.mulf %16, %9 : vector<64x128xf32>
    %18 = arith.addf %13, %17 : vector<64x128xf32>
    %19 = arith.truncf %18 : vector<64x128xf32> to vector<64x128xbf16>
    %c0_10 = arith.constant 0 : index
    %c0_11 = arith.constant 0 : index
    %20 = vector.load %arg5[%c0_10, %c0_11] : memref<64x128xbf16, #tpu.memory_space<vmem>>, vector<64x128xbf16>
    tpu.vector_store %arg5[%c0_10, %c0_11], %19 {strides = array<i32>} : memref<64x128xbf16, #tpu.memory_space<vmem>>, vector<64x128xbf16>,
    return
  }
  func.func @transform_0(%arg0: i32) -> (i32, i32, i32) {
    %c0_i32 = arith.constant 0 : i32
    %c0_i32_0 = arith.constant 0 : i32
    %c0_i32_1 = arith.constant 0 : i32
    return %c0_i32, %arg0, %c0_i32_0 : i32, i32, i32
  }
  func.func @transform_1(%arg0: i32) -> (i32, i32) {
    %c0_i32 = arith.constant 0 : i32
    %c0_i32_0 = arith.constant 0 : i32
    return %arg0, %c0_i32 : i32, i32
  }
  func.func @transform_2(%arg0: i32) -> (i32, i32) {
    %c0_i32 = arith.constant 0 : i32
    %c0_i32_0 = arith.constant 0 : i32
    %c0_i32_1 = arith.constant 0 : i32
    return %c0_i32, %c0_i32_0 : i32, i32
  }
  func.func @transform_3(%arg0: i32) -> (i32, i32) {
    %c0_i32 = arith.constant 0 : i32
    %c0_i32_0 = arith.constant 0 : i32
    %c0_i32_1 = arith.constant 0 : i32
    return %c0_i32, %c0_i32_0 : i32, i32
  }
  func.func @transform_4(%arg0: i32) -> (i32, i32) {
    %c0_i32 = arith.constant 0 : i32
    %c0_i32_0 = arith.constant 0 : i32
    return %arg0, %c0_i32 : i32, i32
  }
}

module attributes {stable_mosaic.version = 11 : i64} {
  func.func @_rpn_head_loss_kernel(%arg0: i32, %arg1: memref<1x8x8x128xbf16, #tpu.memory_space<vmem>>, %arg2: memref<1x64x1xf32, #tpu.memory_space<vmem>>, %arg3: memref<9x128x128xbf16, #tpu.memory_space<vmem>>, %arg4: memref<1x128xf32, #tpu.memory_space<vmem>>, %arg5: memref<128x128xbf16, #tpu.memory_space<vmem>>, %arg6: memref<1x128xf32, #tpu.memory_space<vmem>>, %arg7: memref<1x64x128xbf16, #tpu.memory_space<vmem>>, %arg8: memref<1x1x1xf32, #tpu.memory_space<vmem>>, %arg9: memref<10x10x128xbf16, #tpu.memory_space<vmem>>) attributes {dimension_semantics = [#tpu.dimension_semantics<parallel>], iteration_bounds = array<i64: 2>, scalar_prefetch = 0 : i64, scratch_operands = 1 : i64, tpu.core_type = #tpu.core_type<tc>, window_params = [{transform_indices = @transform_0, window_bounds = array<i64: 1, 8, 8, 128>}, {transform_indices = @transform_1, window_bounds = array<i64: 1, 64, 1>}, {pipeline_mode = #tpu.pipeline_mode<synchronous>, transform_indices = @transform_2, window_bounds = array<i64: 9, 128, 128>}, {pipeline_mode = #tpu.pipeline_mode<synchronous>, transform_indices = @transform_3, window_bounds = array<i64: 1, 128>}, {pipeline_mode = #tpu.pipeline_mode<synchronous>, transform_indices = @transform_4, window_bounds = array<i64: 128, 128>}, {pipeline_mode = #tpu.pipeline_mode<synchronous>, transform_indices = @transform_5, window_bounds = array<i64: 1, 128>}, {transform_indices = @transform_6, window_bounds = array<i64: 1, 64, 128>}, {transform_indices = @transform_7, window_bounds = array<i64: 1, 1, 1>}]} {
    %cst = arith.constant 0.000000e+00 : bf16
    %0 = vector.broadcast %cst : bf16 to vector<10x10x128xbf16>
    %c0 = arith.constant 0 : index
    %c0_0 = arith.constant 0 : index
    %c0_1 = arith.constant 0 : index
    %1 = vector.load %arg9[%c0, %c0_0, %c0_1] : memref<10x10x128xbf16, #tpu.memory_space<vmem>>, vector<10x10x128xbf16>
    tpu.vector_store %arg9[%c0, %c0_0, %c0_1], %0 {strides = array<i32>} : memref<10x10x128xbf16, #tpu.memory_space<vmem>>, vector<10x10x128xbf16>,
    %c0_2 = arith.constant 0 : index
    %c0_3 = arith.constant 0 : index
    %c0_4 = arith.constant 0 : index
    %c0_5 = arith.constant 0 : index
    %2 = vector.load %arg1[%c0_2, %c0_3, %c0_4, %c0_5] : memref<1x8x8x128xbf16, #tpu.memory_space<vmem>>, vector<1x8x8x128xbf16>
    %3 = vector.shape_cast %2 : vector<1x8x8x128xbf16> to vector<8x8x128xbf16>
    %c1 = arith.constant 1 : index
    %c1_6 = arith.constant 1 : index
    %c0_7 = arith.constant 0 : index
    %4 = vector.load %arg9[%c1, %c1_6, %c0_7] : memref<10x10x128xbf16, #tpu.memory_space<vmem>>, vector<8x8x128xbf16>
    tpu.vector_store %arg9[%c1, %c1_6, %c0_7], %3 {strides = array<i32>} : memref<10x10x128xbf16, #tpu.memory_space<vmem>>, vector<8x8x128xbf16>,
    %cst_8 = arith.constant 0.000000e+00 : f32
    %5 = vector.broadcast %cst_8 : f32 to vector<64x128xf32>
    %c0_9 = arith.constant 0 : index
    %c0_10 = arith.constant 0 : index
    %c0_11 = arith.constant 0 : index
    %6 = vector.load %arg9[%c0_9, %c0_10, %c0_11] : memref<10x10x128xbf16, #tpu.memory_space<vmem>>, vector<10x8x128xbf16>
    %7 = vector.extract_strided_slice %6 {offsets = [0, 0, 0], sizes = [8, 8, 128], strides = [1, 1, 1]} : vector<10x8x128xbf16> to vector<8x8x128xbf16>
    %8 = vector.shape_cast %7 : vector<8x8x128xbf16> to vector<64x128xbf16>
    %c0_12 = arith.constant 0 : index
    %c0_13 = arith.constant 0 : index
    %c0_14 = arith.constant 0 : index
    %9 = vector.load %arg3[%c0_12, %c0_13, %c0_14] : memref<9x128x128xbf16, #tpu.memory_space<vmem>>, vector<1x128x128xbf16>
    %10 = vector.shape_cast %9 : vector<1x128x128xbf16> to vector<128x128xbf16>
    %cst_15 = arith.constant dense<0.000000e+00> : vector<64x128xf32>
    %11 = tpu.matmul %8, %10, %cst_15 {dimension_numbers = #tpu.dot_dimension_numbers<[1], [0], [0], [1], [0, 0, 1, 1], [], []>} : vector<64x128xbf16>, vector<128x128xbf16>, vector<64x128xf32> -> vector<64x128xf32>
    %12 = arith.addf %5, %11 : vector<64x128xf32>
    %13 = vector.extract_strided_slice %6 {offsets = [1, 0, 0], sizes = [8, 8, 128], strides = [1, 1, 1]} : vector<10x8x128xbf16> to vector<8x8x128xbf16>
    %14 = vector.shape_cast %13 : vector<8x8x128xbf16> to vector<64x128xbf16>
    %c3 = arith.constant 3 : index
    %c0_16 = arith.constant 0 : index
    %c0_17 = arith.constant 0 : index
    %15 = vector.load %arg3[%c3, %c0_16, %c0_17] : memref<9x128x128xbf16, #tpu.memory_space<vmem>>, vector<1x128x128xbf16>
    %16 = vector.shape_cast %15 : vector<1x128x128xbf16> to vector<128x128xbf16>
    %cst_18 = arith.constant dense<0.000000e+00> : vector<64x128xf32>
    %17 = tpu.matmul %14, %16, %cst_18 {dimension_numbers = #tpu.dot_dimension_numbers<[1], [0], [0], [1], [0, 0, 1, 1], [], []>} : vector<64x128xbf16>, vector<128x128xbf16>, vector<64x128xf32> -> vector<64x128xf32>
    %18 = arith.addf %12, %17 : vector<64x128xf32>
    %19 = vector.extract_strided_slice %6 {offsets = [2, 0, 0], sizes = [8, 8, 128], strides = [1, 1, 1]} : vector<10x8x128xbf16> to vector<8x8x128xbf16>
    %20 = vector.shape_cast %19 : vector<8x8x128xbf16> to vector<64x128xbf16>
    %c6 = arith.constant 6 : index
    %c0_19 = arith.constant 0 : index
    %c0_20 = arith.constant 0 : index
    %21 = vector.load %arg3[%c6, %c0_19, %c0_20] : memref<9x128x128xbf16, #tpu.memory_space<vmem>>, vector<1x128x128xbf16>
    %22 = vector.shape_cast %21 : vector<1x128x128xbf16> to vector<128x128xbf16>
    %cst_21 = arith.constant dense<0.000000e+00> : vector<64x128xf32>
    %23 = tpu.matmul %20, %22, %cst_21 {dimension_numbers = #tpu.dot_dimension_numbers<[1], [0], [0], [1], [0, 0, 1, 1], [], []>} : vector<64x128xbf16>, vector<128x128xbf16>, vector<64x128xf32> -> vector<64x128xf32>
    %24 = arith.addf %18, %23 : vector<64x128xf32>
    %c0_22 = arith.constant 0 : index
    %c1_23 = arith.constant 1 : index
    %c0_24 = arith.constant 0 : index
    %25 = vector.load %arg9[%c0_22, %c1_23, %c0_24] : memref<10x10x128xbf16, #tpu.memory_space<vmem>>, vector<10x8x128xbf16>
    %26 = vector.extract_strided_slice %25 {offsets = [0, 0, 0], sizes = [8, 8, 128], strides = [1, 1, 1]} : vector<10x8x128xbf16> to vector<8x8x128xbf16>
    %27 = vector.shape_cast %26 : vector<8x8x128xbf16> to vector<64x128xbf16>
    %c1_25 = arith.constant 1 : index
    %c0_26 = arith.constant 0 : index
    %c0_27 = arith.constant 0 : index
    %28 = vector.load %arg3[%c1_25, %c0_26, %c0_27] : memref<9x128x128xbf16, #tpu.memory_space<vmem>>, vector<1x128x128xbf16>
    %29 = vector.shape_cast %28 : vector<1x128x128xbf16> to vector<128x128xbf16>
    %cst_28 = arith.constant dense<0.000000e+00> : vector<64x128xf32>
    %30 = tpu.matmul %27, %29, %cst_28 {dimension_numbers = #tpu.dot_dimension_numbers<[1], [0], [0], [1], [0, 0, 1, 1], [], []>} : vector<64x128xbf16>, vector<128x128xbf16>, vector<64x128xf32> -> vector<64x128xf32>
    %31 = arith.addf %24, %30 : vector<64x128xf32>
    %32 = vector.extract_strided_slice %25 {offsets = [1, 0, 0], sizes = [8, 8, 128], strides = [1, 1, 1]} : vector<10x8x128xbf16> to vector<8x8x128xbf16>
    %33 = vector.shape_cast %32 : vector<8x8x128xbf16> to vector<64x128xbf16>
    %c4 = arith.constant 4 : index
    %c0_29 = arith.constant 0 : index
    %c0_30 = arith.constant 0 : index
    %34 = vector.load %arg3[%c4, %c0_29, %c0_30] : memref<9x128x128xbf16, #tpu.memory_space<vmem>>, vector<1x128x128xbf16>
    %35 = vector.shape_cast %34 : vector<1x128x128xbf16> to vector<128x128xbf16>
    %cst_31 = arith.constant dense<0.000000e+00> : vector<64x128xf32>
    %36 = tpu.matmul %33, %35, %cst_31 {dimension_numbers = #tpu.dot_dimension_numbers<[1], [0], [0], [1], [0, 0, 1, 1], [], []>} : vector<64x128xbf16>, vector<128x128xbf16>, vector<64x128xf32> -> vector<64x128xf32>
    %37 = arith.addf %31, %36 : vector<64x128xf32>
    %38 = vector.extract_strided_slice %25 {offsets = [2, 0, 0], sizes = [8, 8, 128], strides = [1, 1, 1]} : vector<10x8x128xbf16> to vector<8x8x128xbf16>
    %39 = vector.shape_cast %38 : vector<8x8x128xbf16> to vector<64x128xbf16>
    %c7 = arith.constant 7 : index
    %c0_32 = arith.constant 0 : index
    %c0_33 = arith.constant 0 : index
    %40 = vector.load %arg3[%c7, %c0_32, %c0_33] : memref<9x128x128xbf16, #tpu.memory_space<vmem>>, vector<1x128x128xbf16>
    %41 = vector.shape_cast %40 : vector<1x128x128xbf16> to vector<128x128xbf16>
    %cst_34 = arith.constant dense<0.000000e+00> : vector<64x128xf32>
    %42 = tpu.matmul %39, %41, %cst_34 {dimension_numbers = #tpu.dot_dimension_numbers<[1], [0], [0], [1], [0, 0, 1, 1], [], []>} : vector<64x128xbf16>, vector<128x128xbf16>, vector<64x128xf32> -> vector<64x128xf32>
    %43 = arith.addf %37, %42 : vector<64x128xf32>
    %c0_35 = arith.constant 0 : index
    %c2 = arith.constant 2 : index
    %c0_36 = arith.constant 0 : index
    %44 = vector.load %arg9[%c0_35, %c2, %c0_36] : memref<10x10x128xbf16, #tpu.memory_space<vmem>>, vector<10x8x128xbf16>
    %45 = vector.extract_strided_slice %44 {offsets = [0, 0, 0], sizes = [8, 8, 128], strides = [1, 1, 1]} : vector<10x8x128xbf16> to vector<8x8x128xbf16>
    %46 = vector.shape_cast %45 : vector<8x8x128xbf16> to vector<64x128xbf16>
    %c2_37 = arith.constant 2 : index
    %c0_38 = arith.constant 0 : index
    %c0_39 = arith.constant 0 : index
    %47 = vector.load %arg3[%c2_37, %c0_38, %c0_39] : memref<9x128x128xbf16, #tpu.memory_space<vmem>>, vector<1x128x128xbf16>
    %48 = vector.shape_cast %47 : vector<1x128x128xbf16> to vector<128x128xbf16>
    %cst_40 = arith.constant dense<0.000000e+00> : vector<64x128xf32>
    %49 = tpu.matmul %46, %48, %cst_40 {dimension_numbers = #tpu.dot_dimension_numbers<[1], [0], [0], [1], [0, 0, 1, 1], [], []>} : vector<64x128xbf16>, vector<128x128xbf16>, vector<64x128xf32> -> vector<64x128xf32>
    %50 = arith.addf %43, %49 : vector<64x128xf32>
    %51 = vector.extract_strided_slice %44 {offsets = [1, 0, 0], sizes = [8, 8, 128], strides = [1, 1, 1]} : vector<10x8x128xbf16> to vector<8x8x128xbf16>
    %52 = vector.shape_cast %51 : vector<8x8x128xbf16> to vector<64x128xbf16>
    %c5 = arith.constant 5 : index
    %c0_41 = arith.constant 0 : index
    %c0_42 = arith.constant 0 : index
    %53 = vector.load %arg3[%c5, %c0_41, %c0_42] : memref<9x128x128xbf16, #tpu.memory_space<vmem>>, vector<1x128x128xbf16>
    %54 = vector.shape_cast %53 : vector<1x128x128xbf16> to vector<128x128xbf16>
    %cst_43 = arith.constant dense<0.000000e+00> : vector<64x128xf32>
    %55 = tpu.matmul %52, %54, %cst_43 {dimension_numbers = #tpu.dot_dimension_numbers<[1], [0], [0], [1], [0, 0, 1, 1], [], []>} : vector<64x128xbf16>, vector<128x128xbf16>, vector<64x128xf32> -> vector<64x128xf32>
    %56 = arith.addf %50, %55 : vector<64x128xf32>
    %57 = vector.extract_strided_slice %44 {offsets = [2, 0, 0], sizes = [8, 8, 128], strides = [1, 1, 1]} : vector<10x8x128xbf16> to vector<8x8x128xbf16>
    %58 = vector.shape_cast %57 : vector<8x8x128xbf16> to vector<64x128xbf16>
    %c8 = arith.constant 8 : index
    %c0_44 = arith.constant 0 : index
    %c0_45 = arith.constant 0 : index
    %59 = vector.load %arg3[%c8, %c0_44, %c0_45] : memref<9x128x128xbf16, #tpu.memory_space<vmem>>, vector<1x128x128xbf16>
    %60 = vector.shape_cast %59 : vector<1x128x128xbf16> to vector<128x128xbf16>
    %cst_46 = arith.constant dense<0.000000e+00> : vector<64x128xf32>
    %61 = tpu.matmul %58, %60, %cst_46 {dimension_numbers = #tpu.dot_dimension_numbers<[1], [0], [0], [1], [0, 0, 1, 1], [], []>} : vector<64x128xbf16>, vector<128x128xbf16>, vector<64x128xf32> -> vector<64x128xf32>
    %62 = arith.addf %56, %61 : vector<64x128xf32>
    %c0_47 = arith.constant 0 : index
    %c0_48 = arith.constant 0 : index
    %63 = vector.load %arg4[%c0_47, %c0_48] : memref<1x128xf32, #tpu.memory_space<vmem>>, vector<1x128xf32>
    %64 = vector.broadcast %63 : vector<1x128xf32> to vector<64x128xf32>
    %65 = arith.addf %62, %64 : vector<64x128xf32>
    %cst_49 = arith.constant 0.000000e+00 : f32
    %66 = vector.broadcast %cst_49 : f32 to vector<64x128xf32>
    %67 = arith.maximumf %65, %66 : vector<64x128xf32>
    %68 = arith.truncf %67 : vector<64x128xf32> to vector<64x128xbf16>
    %c0_50 = arith.constant 0 : index
    %c0_51 = arith.constant 0 : index
    %69 = vector.load %arg5[%c0_50, %c0_51] : memref<128x128xbf16, #tpu.memory_space<vmem>>, vector<128x128xbf16>
    %cst_52 = arith.constant dense<0.000000e+00> : vector<64x128xf32>
    %70 = tpu.matmul %68, %69, %cst_52 {dimension_numbers = #tpu.dot_dimension_numbers<[1], [0], [0], [1], [0, 0, 1, 1], [], []>} : vector<64x128xbf16>, vector<128x128xbf16>, vector<64x128xf32> -> vector<64x128xf32>
    %c0_53 = arith.constant 0 : index
    %c0_54 = arith.constant 0 : index
    %71 = vector.load %arg6[%c0_53, %c0_54] : memref<1x128xf32, #tpu.memory_space<vmem>>, vector<1x128xf32>
    %72 = vector.broadcast %71 : vector<1x128xf32> to vector<64x128xf32>
    %73 = arith.addf %70, %72 : vector<64x128xf32>
    %74 = arith.truncf %73 : vector<64x128xf32> to vector<64x128xbf16>
    %c0_55 = arith.constant 0 : index
    %c0_56 = arith.constant 0 : index
    %c0_57 = arith.constant 0 : index
    %75 = vector.load %arg7[%c0_55, %c0_56, %c0_57] : memref<1x64x128xbf16, #tpu.memory_space<vmem>>, vector<1x64x128xbf16>
    %76 = vector.shape_cast %75 : vector<1x64x128xbf16> to vector<64x128xbf16>
    %77 = vector.shape_cast %74 : vector<64x128xbf16> to vector<1x64x128xbf16>
    tpu.vector_store %arg7[%c0_55, %c0_56, %c0_57], %77 {strides = array<i32>} : memref<1x64x128xbf16, #tpu.memory_space<vmem>>, vector<1x64x128xbf16>,
    %c0_58 = arith.constant 0 : index
    %c0_59 = arith.constant 0 : index
    %c0_60 = arith.constant 0 : index
    %78 = vector.load %arg2[%c0_58, %c0_59, %c0_60] : memref<1x64x1xf32, #tpu.memory_space<vmem>>, vector<1x64x1xf32>
    %79 = vector.shape_cast %78 : vector<1x64x1xf32> to vector<64x1xf32>
    %80 = tpu.iota {dimensions = array<i32: 1>} : vector<64x128xi32>
    %c3_i32 = arith.constant 3 : i32
    %81 = vector.broadcast %c3_i32 : i32 to vector<64x128xi32>
    %82 = arith.cmpi slt, %80, %81 : vector<64x128xi32>
    %83 = arith.extui %82 : vector<64x128xi1> to vector<64x128xi32>
    %84 = arith.sitofp %83 : vector<64x128xi32> to vector<64x128xf32>
    %cst_61 = arith.constant 0.000000e+00 : f32
    %85 = vector.broadcast %cst_61 : f32 to vector<64x128xf32>
    %86 = arith.maximumf %73, %85 : vector<64x128xf32>
    %87 = vector.broadcast %79 : vector<64x1xf32> to vector<64x128xf32>
    %88 = arith.mulf %73, %87 : vector<64x128xf32>
    %89 = arith.subf %86, %88 : vector<64x128xf32>
    %90 = math.absf %73 : vector<64x128xf32>
    %cst_62 = arith.constant 0.000000e+00 : f32
    %91 = vector.broadcast %cst_62 : f32 to vector<64x128xf32>
    %92 = arith.subf %91, %90 : vector<64x128xf32>
    %93 = math.exp %92 : vector<64x128xf32>
    %94 = math.log1p %93 : vector<64x128xf32>
    %95 = arith.addf %89, %94 : vector<64x128xf32>
    %cst_63 = arith.constant 0.000000e+00 : f32
    %96 = vector.broadcast %cst_63 : f32 to vector<1x1x1xf32>
    %97 = arith.mulf %95, %84 : vector<64x128xf32>
    %98 = vector.shape_cast %97 : vector<64x128xf32> to vector<1x64x128xf32>
    %cst_64 = arith.constant dense<0.000000e+00> : vector<1xf32>
    %99 = vector.multi_reduction <add>, %98, %cst_64 [1, 2] : vector<1x64x128xf32> to vector<1xf32>
    %100 = vector.shape_cast %99 : vector<1xf32> to vector<1x1x1xf32>
    %101 = vector.extract %100[0, 0, 0] : f32 from vector<1x1x1xf32>
    %102 = vector.broadcast %101 : f32 to vector<1x1x1xf32>
    %103 = arith.addf %96, %102 : vector<1x1x1xf32>
    %c0_65 = arith.constant 0 : index
    %c0_66 = arith.constant 0 : index
    %c0_67 = arith.constant 0 : index
    %104 = vector.load %arg8[%c0_65, %c0_66, %c0_67] : memref<1x1x1xf32, #tpu.memory_space<vmem>>, vector<1x1x1xf32>
    tpu.vector_store %arg8[%c0_65, %c0_66, %c0_67], %103 {strides = array<i32>} : memref<1x1x1xf32, #tpu.memory_space<vmem>>, vector<1x1x1xf32>,
    return
  }
  func.func @transform_0(%arg0: i32) -> (i32, i32, i32, i32) {
    %c0_i32 = arith.constant 0 : i32
    %c0_i32_0 = arith.constant 0 : i32
    %c0_i32_1 = arith.constant 0 : i32
    %c0_i32_2 = arith.constant 0 : i32
    return %arg0, %c0_i32, %c0_i32_0, %c0_i32_1 : i32, i32, i32, i32
  }
  func.func @transform_1(%arg0: i32) -> (i32, i32, i32) {
    %c0_i32 = arith.constant 0 : i32
    %c0_i32_0 = arith.constant 0 : i32
    %c0_i32_1 = arith.constant 0 : i32
    return %arg0, %c0_i32, %c0_i32_0 : i32, i32, i32
  }
  func.func @transform_2(%arg0: i32) -> (i32, i32, i32) {
    %c0_i32 = arith.constant 0 : i32
    %c0_i32_0 = arith.constant 0 : i32
    %c0_i32_1 = arith.constant 0 : i32
    %c0_i32_2 = arith.constant 0 : i32
    return %c0_i32, %c0_i32_0, %c0_i32_1 : i32, i32, i32
  }
  func.func @transform_3(%arg0: i32) -> (i32, i32) {
    %c0_i32 = arith.constant 0 : i32
    %c0_i32_0 = arith.constant 0 : i32
    %c0_i32_1 = arith.constant 0 : i32
    return %c0_i32, %c0_i32_0 : i32, i32
  }
  func.func @transform_4(%arg0: i32) -> (i32, i32) {
    %c0_i32 = arith.constant 0 : i32
    %c0_i32_0 = arith.constant 0 : i32
    %c0_i32_1 = arith.constant 0 : i32
    return %c0_i32, %c0_i32_0 : i32, i32
  }
  func.func @transform_5(%arg0: i32) -> (i32, i32) {
    %c0_i32 = arith.constant 0 : i32
    %c0_i32_0 = arith.constant 0 : i32
    %c0_i32_1 = arith.constant 0 : i32
    return %c0_i32, %c0_i32_0 : i32, i32
  }
  func.func @transform_6(%arg0: i32) -> (i32, i32, i32) {
    %c0_i32 = arith.constant 0 : i32
    %c0_i32_0 = arith.constant 0 : i32
    %c0_i32_1 = arith.constant 0 : i32
    return %arg0, %c0_i32, %c0_i32_0 : i32, i32, i32
  }
  func.func @transform_7(%arg0: i32) -> (i32, i32, i32) {
    %c0_i32 = arith.constant 0 : i32
    %c0_i32_0 = arith.constant 0 : i32
    %c0_i32_1 = arith.constant 0 : i32
    return %arg0, %c0_i32, %c0_i32_0 : i32, i32, i32
  }
}

</mosaic_0001>

<llo_original>
// kernel: inod_rcnn_forward.2
$region0: #{inod_rcnn_forward.2}
  #allocation0 [shape = 'u32[]', space=smem, size = 0x4, offset = 0x4, fixed_abs, tag = 'smem constant byte address 0x4 - core index']
  #allocation1 [shape = 'u32[72,128]{1,0:T(1,128)}', space=vmem, size = 0x9000, scoped, tag = 'internal scratch']
  %s0 = inlined_call_operand.vmem [shape: bf16[2,128,48], index: 0, kind: input, shape index: {}]
  %s1 = inlined_call_operand.vmem [shape: f32[128,1], index: 1, kind: input, shape index: {}]
  %s2 = inlined_call_operand.vmem [shape: bf16[48,128], index: 2, kind: input, shape index: {}]
  %s3 = inlined_call_operand.vmem [shape: f32[1,128], index: 3, kind: input, shape index: {}]
  %s4 = inlined_call_operand.vmem [shape: bf16[128,128], index: 4, kind: output, shape index: {}]
  %s5 = sld [smem:[#allocation0]]
  $region90: #{inod_rcnn_forward.2} parent=0
    _
  %s7 = ssub.s32 1, %s5
  %s8 = scalar_select 0, %s7, %s5
  $region1: #{inod_rcnn_forward.2} parent=0
    #allocation2 [shape = 'u8[65536]{0}', space=vmem, size = 0x10000, scoped, tag = 'input window, operand 0']
    loop: start=0, step=1, limit=4
    $region2: #{inod_rcnn_forward.2} parent=1 // loop_pre_header
      _
    $region3: #{inod_rcnn_forward.2} parent=1 // loop_header
      %s10 = sphi 0, %s14
      %p11 = scmp.ge.s32.totalorder %s10, 4
      %s20 = sphi 0, %s22
      %s23 = sphi 0, %s20
      %s24 = sphi 0, %s23
      %s40 = sphi 0, %s24
      %s46 = sphi 0, %s48
      %s49 = sphi 0, %s46
      %s50 = sphi 0, %s49
      %s66 = sphi 0, %s50
      %s70 = sphi 0, %s70
      %s72 = sphi 0, %s70
      %s73 = sphi 0, %s72
      %s87 = sphi 0, %s73
      %s91 = sphi 0, %s91
      %s93 = sphi 0, %s91
      %s94 = sphi 0, %s93
      %s108 = sphi 0, %s94
      %s114 = sphi 0, %s116
      %s117 = sphi 0, %s114
      %s118 = sphi 0, %s117
      %s134 = sphi 0, %s118
    $region4: #{inod_rcnn_forward.2} parent=1 // loop_header_branch
      %13 = sbr.rel (%p11) target = $region8
    $region5: #{inod_rcnn_forward.2} parent=1 // loop_body
      %s15 = ssub.s32 %s10, 1
      %s16 = ssub.s32 %s10, 2
      %s17 = sadd.s32 %s10, 1
      %s18 = ssub.s32 %s10, %s17
      %p19 = scmp.eq.s32.totalorder %s18, 0
      %s21 = sadd.s32 %s20, 1
      %s22 = scalar_select %p19, %s20, %s21
      %p25 = pneg %p19
      %p26 = scmp.eq.s32.totalorder %s10, 1
      %p27 = por %p25, %p26
      %p28 = scmp.ne.s32.totalorder %s20, %s23
      %p29 = scmp.eq.s32.totalorder %s10, 0
      %p30 = por %p28, %p29
      %p31 = scmp.ne.s32.totalorder %s20, %s23
      %p32 = scmp.eq.s32.totalorder %s15, 1
      %p33 = por %p31, %p32
      %p34 = scmp.ne.s32.totalorder %s23, %s24
      %p35 = scmp.eq.s32.totalorder %s15, 0
      %p36 = por %p34, %p35
      %p37 = scmp.ne.s32.totalorder %s23, %s24
      %p38 = scmp.eq.s32.totalorder %s16, 1
      %p39 = por %p37, %p38
      %p41 = scmp.ne.s32.totalorder %s24, %s40
      %p42 = scmp.eq.s32.totalorder %s16, 0
      %p43 = por %p41, %p42
      %s44 = ssub.s32 %s10, %s17
      %p45 = scmp.eq.s32.totalorder %s44, 0
      %s47 = sadd.s32 %s46, 1
      %s48 = scalar_select %p45, %s46, %s47
      %p51 = pneg %p45
      %p52 = scmp.eq.s32.totalorder %s10, 1
      %p53 = por %p51, %p52
      %p54 = scmp.ne.s32.totalorder %s46, %s49
      %p55 = scmp.eq.s32.totalorder %s10, 0
      %p56 = por %p54, %p55
      %p57 = scmp.ne.s32.totalorder %s46, %s49
      %p58 = scmp.eq.s32.totalorder %s15, 1
      %p59 = por %p57, %p58
      %p60 = scmp.ne.s32.totalorder %s49, %s50
      %p61 = scmp.eq.s32.totalorder %s15, 0
      %p62 = por %p60, %p61
      %p63 = scmp.ne.s32.totalorder %s49, %s50
      %p64 = scmp.eq.s32.totalorder %s16, 1
      %p65 = por %p63, %p64
      %p67 = scmp.ne.s32.totalorder %s50, %s66
      %p68 = scmp.eq.s32.totalorder %s16, 0
      %p69 = por %p67, %p68
      %s71 = sadd.s32 %s70, 1
      %p74 = scmp.eq.s32.totalorder %s10, 1
      %p75 = scmp.ne.s32.totalorder %s70, %s72
      %p76 = scmp.eq.s32.totalorder %s10, 0
      %p77 = por %p75, %p76
      %p78 = scmp.ne.s32.totalorder %s70, %s72
      %p79 = scmp.eq.s32.totalorder %s15, 1
      %p80 = por %p78, %p79
      %p81 = scmp.ne.s32.totalorder %s72, %s73
      %p82 = scmp.eq.s32.totalorder %s15, 0
      %p83 = por %p81, %p82
      %p84 = scmp.ne.s32.totalorder %s72, %s73
      %p85 = scmp.eq.s32.totalorder %s16, 1
      %p86 = por %p84, %p85
      %p88 = scmp.ne.s32.totalorder %s73, %s87
      %p89 = scmp.eq.s32.totalorder %s16, 0
      %p90 = por %p88, %p89
      %s92 = sadd.s32 %s91, 1
      %p95 = scmp.eq.s32.totalorder %s10, 1
      %p96 = scmp.ne.s32.totalorder %s91, %s93
      %p97 = scmp.eq.s32.totalorder %s10, 0
      %p98 = por %p96, %p97
      %p99 = scmp.ne.s32.totalorder %s91, %s93
      %p100 = scmp.eq.s32.totalorder %s15, 1
      %p101 = por %p99, %p100
      %p102 = scmp.ne.s32.totalorder %s93, %s94
      %p103 = scmp.eq.s32.totalorder %s15, 0
      %p104 = por %p102, %p103
      %p105 = scmp.ne.s32.totalorder %s93, %s94
      %p106 = scmp.eq.s32.totalorder %s16, 1
      %p107 = por %p105, %p106
      %p109 = scmp.ne.s32.totalorder %s94, %s108
      %p110 = scmp.eq.s32.totalorder %s16, 0
      %p111 = por %p109, %p110
      %s112 = ssub.s32 %s10, %s17
      %p113 = scmp.eq.s32.totalorder %s112, 0
      %s115 = sadd.s32 %s114, 1
      %s116 = scalar_select %p113, %s114, %s115
      %p119 = pneg %p113
      %p120 = scmp.eq.s32.totalorder %s10, 1
      %p121 = por %p119, %p120
      %p122 = scmp.ne.s32.totalorder %s114, %s117
      %p123 = scmp.eq.s32.totalorder %s10, 0
      %p124 = por %p122, %p123
      %p125 = scmp.ne.s32.totalorder %s114, %s117
      %p126 = scmp.eq.s32.totalorder %s15, 1
      %p127 = por %p125, %p126
      %p128 = scmp.ne.s32.totalorder %s117, %s118
      %p129 = scmp.eq.s32.totalorder %s15, 0
      %p130 = por %p128, %p129
      %p131 = scmp.ne.s32.totalorder %s117, %s118
      %p132 = scmp.eq.s32.totalorder %s16, 1
      %p133 = por %p131, %p132
      %p135 = scmp.ne.s32.totalorder %s118, %s134
      %p136 = scmp.eq.s32.totalorder %s16, 0
      %p137 = por %p135, %p136
      %p138 = scmp.le.s32.totalorder 1, %s10
      %p139 = scmp.lt.s32.totalorder %s10, 3
      %p140 = pnand %p138, %p139
      %p141 = pneg %p140
      // Predicated region
      $region9: #{inod_rcnn_forward.2} parent=5 // pred_check
        _
      $region10: #{inod_rcnn_forward.2} parent=5 // pred_check_branch
        %143 = sbr.rel (%p140) target = $region12
      $region11: #{inod_rcnn_forward.2} parent=5 // pred_region
        %s144 = ssub.s32 %s10, 1
        // Predicated region
        $region13: #{inod_rcnn_forward.2} parent=11 // pred_check
          %p145 = pneg %p83
        $region14: #{inod_rcnn_forward.2} parent=11 // pred_check_branch
          %147 = sbr.rel (%p145) target = $region16
        $region15: #{inod_rcnn_forward.2} parent=11 // pred_region
          _
        $region16: #{inod_rcnn_forward.2} parent=11 // pred_fallthru
          _
        // Predicated region
        $region17: #{inod_rcnn_forward.2} parent=11 // pred_check
          %p148 = pneg %p104
        $region18: #{inod_rcnn_forward.2} parent=11 // pred_check_branch
          %150 = sbr.rel (%p148) target = $region20
        $region19: #{inod_rcnn_forward.2} parent=11 // pred_region
          _
        $region20: #{inod_rcnn_forward.2} parent=11 // pred_fallthru
          _
      $region12: #{inod_rcnn_forward.2} parent=5 // pred_fallthru
        _
      %p151 = scmp.lt.s32.totalorder %s10, 2
      // Predicated region
      $region21: #{inod_rcnn_forward.2} parent=5 // pred_check
        %p152 = pneg %p151
      $region22: #{inod_rcnn_forward.2} parent=5 // pred_check_branch
        %154 = sbr.rel (%p152) target = $region24
      $region23: #{inod_rcnn_forward.2} parent=5 // pred_region
        // Predicated region
        $region25: #{inod_rcnn_forward.2} parent=23 // pred_check
          %p155 = pneg %p30
        $region26: #{inod_rcnn_forward.2} parent=23 // pred_check_branch
          %157 = sbr.rel (%p155) target = $region28
        $region27: #{inod_rcnn_forward.2} parent=23 // pred_region
          %s158 = sand.u32 %s20, 1
          %s159 = sand.u32 %s20, 1
          %s160 = smul.addr %s159, 64
          %s161 = scalar_lea.vmem [#allocation2], %s160
          %s162 = smul.u32 8, %s10
          %s163 = smul.addr %s162, 4
          %s164 = scalar_lea.vmem %s0, %s163
          // Predicated region
          $region29: #{inod_rcnn_forward.2} parent=27 // pred_check
            _
          $region30: #{inod_rcnn_forward.2} parent=27 // pred_check_branch
            %166 = sbr.rel (0) target = $region32
          $region31: #{inod_rcnn_forward.2} parent=27 // pred_region
            // Predicated region
            $region33: #{inod_rcnn_forward.2} parent=31 // pred_check
              _
            $region34: #{inod_rcnn_forward.2} parent=31 // pred_check_branch
              %168 = sbr.rel target = $region36
            $region35: #{inod_rcnn_forward.2} parent=31 // pred_region
              // Predicated region
              $region48: #{inod_rcnn_forward.2} parent=35 // pred_check
                _
              $region49: #{inod_rcnn_forward.2} parent=35 // pred_check_branch
                %214 = sbr.rel (0) target = $region51
              $region50: #{inod_rcnn_forward.2} parent=35 // pred_region
                loop: start=0, step=1, limit=1
                $region52: #{inod_rcnn_forward.2} parent=50 // loop_pre_header
                  _
                $region53: #{inod_rcnn_forward.2} parent=50 // loop_header
                  %s216 = sphi 0, %s220
                  %p217 = scmp.ge.s32.totalorder %s216, 1
                  %s221 = sphi %s164, %s164
                  %s222 = sphi %s161, %s161
                $region54: #{inod_rcnn_forward.2} parent=50 // loop_header_branch
                  %219 = sbr.rel (%p217) target = $region58
                $region55: #{inod_rcnn_forward.2} parent=50 // loop_body
                  _
                $region56: #{inod_rcnn_forward.2} parent=50 // loop_footer
                  %s220 = sadd.s32 1, %s216
                $region57: #{inod_rcnn_forward.2} parent=50 // loop_footer_branch
                  %215 = sbr.rel target = $region53
                $region58: #{inod_rcnn_forward.2} parent=50 // loop_exit
                  _
                %s224 = ssub.s32 16, 1
                loop: start=0, step=1, limit=1
                $region59: #{inod_rcnn_forward.2} parent=50 // loop_pre_header
                  _
                $region60: #{inod_rcnn_forward.2} parent=50 // loop_header
                  %s226 = sphi 0, %s230
                  %p227 = scmp.ge.s32.totalorder %s226, 1
                  %s231 = sphi %s164, %s164
                  %s232 = sphi %s161, %s161
                $region61: #{inod_rcnn_forward.2} parent=50 // loop_header_branch
                  %229 = sbr.rel (%p227) target = $region65
                $region62: #{inod_rcnn_forward.2} parent=50 // loop_body
                  %v233 = vld [vmem:[%s231] sm:%s224]
                  %234 = vst [vmem:[%s232] sm:%s224] %v233
                  %v235 = vld [vmem:[%s231 + $0x4] sm:%s224]
                  %236 = vst [vmem:[%s232 + $0x4] sm:%s224] %v235
                  %v237 = vld [vmem:[%s231 + $0x8] sm:%s224]
                  %238 = vst [vmem:[%s232 + $0x8] sm:%s224] %v237
                  %v239 = vld [vmem:[%s231 + $0xc] sm:%s224]
                  %240 = vst [vmem:[%s232 + $0xc] sm:%s224] %v239
                  %v241 = vld [vmem:[%s231 + $0x10] sm:%s224]
                  %242 = vst [vmem:[%s232 + $0x10] sm:%s224] %v241
                  %v243 = vld [vmem:[%s231 + $0x14] sm:%s224]
                  %244 = vst [vmem:[%s232 + $0x14] sm:%s224] %v243
                  %v245 = vld [vmem:[%s231 + $0x18] sm:%s224]
                  %246 = vst [vmem:[%s232 + $0x18] sm:%s224] %v245
                  %v247 = vld [vmem:[%s231 + $0x1c] sm:%s224]
                  %248 = vst [vmem:[%s232 + $0x1c] sm:%s224] %v247
                  %v249 = vld [vmem:[%s231 + $0x40] sm:%s224]
                  %250 = vst [vmem:[%s232 + $0x20] sm:%s224] %v249
                  %v251 = vld [vmem:[%s231 + $0x44] sm:%s224]
                  %252 = vst [vmem:[%s232 + $0x24] sm:%s224] %v251
                  %v253 = vld [vmem:[%s231 + $0x48] sm:%s224]
                  %254 = vst [vmem:[%s232 + $0x28] sm:%s224] %v253
                  %v255 = vld [vmem:[%s231 + $0x4c] sm:%s224]
                  %256 = vst [vmem:[%s232 + $0x2c] sm:%s224] %v255
                  %v257 = vld [vmem:[%s231 + $0x50] sm:%s224]
                  %258 = vst [vmem:[%s232 + $0x30] sm:%s224] %v257
                  %v259 = vld [vmem:[%s231 + $0x54] sm:%s224]
                  %260 = vst [vmem:[%s232 + $0x34] sm:%s224] %v259
                  %v261 = vld [vmem:[%s231 + $0x58] sm:%s224]
                  %262 = vst [vmem:[%s232 + $0x38] sm:%s224] %v261
                  %v263 = vld [vmem:[%s231 + $0x5c] sm:%s224]
                  %264 = vst [vmem:[%s232 + $0x3c] sm:%s224] %v263
                $region63: #{inod_rcnn_forward.2} parent=50 // loop_footer
                  %s230 = sadd.s32 1, %s226
                $region64: #{inod_rcnn_forward.2} parent=50 // loop_footer_branch
                  %225 = sbr.rel target = $region60
                $region65: #{inod_rcnn_forward.2} parent=50 // loop_exit
                  _
              $region51: #{inod_rcnn_forward.2} parent=35 // pred_fallthru
                _
            $region36: #{inod_rcnn_forward.2} parent=31 // pred_fallthru
              _
            // Predicated region
            $region37: #{inod_rcnn_forward.2} parent=31 // pred_check
              _
            $region38: #{inod_rcnn_forward.2} parent=31 // pred_check_branch
              %170 = sbr.rel (0) target = $region40
            $region39: #{inod_rcnn_forward.2} parent=31 // pred_region
              %s172 = ssub.s32 16, 1
              loop: start=0, step=1, limit=1
              $region41: #{inod_rcnn_forward.2} parent=39 // loop_pre_header
                _
              $region42: #{inod_rcnn_forward.2} parent=39 // loop_header
                %s174 = sphi 0, %s178
                %p175 = scmp.ge.s32.totalorder %s174, 1
                %s179 = sphi %s164, %s164
                %s180 = sphi %s161, %s161
              $region43: #{inod_rcnn_forward.2} parent=39 // loop_header_branch
                %177 = sbr.rel (%p175) target = $region47
              $region44: #{inod_rcnn_forward.2} parent=39 // loop_body
                %v181 = vld [vmem:[%s179] sm:%s172]
                %182 = vst [vmem:[%s180] sm:%s172] %v181
                %v183 = vld [vmem:[%s179 + $0x4] sm:%s172]
                %184 = vst [vmem:[%s180 + $0x4] sm:%s172] %v183
                %v185 = vld [vmem:[%s179 + $0x8] sm:%s172]
                %186 = vst [vmem:[%s180 + $0x8] sm:%s172] %v185
                %v187 = vld [vmem:[%s179 + $0xc] sm:%s172]
                %188 = vst [vmem:[%s180 + $0xc] sm:%s172] %v187
                %v189 = vld [vmem:[%s179 + $0x10] sm:%s172]
                %190 = vst [vmem:[%s180 + $0x10] sm:%s172] %v189
                %v191 = vld [vmem:[%s179 + $0x14] sm:%s172]
                %192 = vst [vmem:[%s180 + $0x14] sm:%s172] %v191
                %v193 = vld [vmem:[%s179 + $0x18] sm:%s172]
                %194 = vst [vmem:[%s180 + $0x18] sm:%s172] %v193
                %v195 = vld [vmem:[%s179 + $0x1c] sm:%s172]
                %196 = vst [vmem:[%s180 + $0x1c] sm:%s172] %v195
                %v197 = vld [vmem:[%s179 + $0x40] sm:%s172]
                %198 = vst [vmem:[%s180 + $0x20] sm:%s172] %v197
                %v199 = vld [vmem:[%s179 + $0x44] sm:%s172]
                %200 = vst [vmem:[%s180 + $0x24] sm:%s172] %v199
                %v201 = vld [vmem:[%s179 + $0x48] sm:%s172]
                %202 = vst [vmem:[%s180 + $0x28] sm:%s172] %v201
                %v203 = vld [vmem:[%s179 + $0x4c] sm:%s172]
                %204 = vst [vmem:[%s180 + $0x2c] sm:%s172] %v203
                %v205 = vld [vmem:[%s179 + $0x50] sm:%s172]
                %206 = vst [vmem:[%s180 + $0x30] sm:%s172] %v205
                %v207 = vld [vmem:[%s179 + $0x54] sm:%s172]
                %208 = vst [vmem:[%s180 + $0x34] sm:%s172] %v207
                %v209 = vld [vmem:[%s179 + $0x58] sm:%s172]
                %210 = vst [vmem:[%s180 + $0x38] sm:%s172] %v209
                %v211 = vld [vmem:[%s179 + $0x5c] sm:%s172]
                %212 = vst [vmem:[%s180 + $0x3c] sm:%s172] %v211
              $region45: #{inod_rcnn_forward.2} parent=39 // loop_footer
                %s178 = sadd.s32 1, %s174
              $region46: #{inod_rcnn_forward.2} parent=39 // loop_footer_branch
                %173 = sbr.rel target = $region42
              $region47: #{inod_rcnn_forward.2} parent=39 // loop_exit
                _
            $region40: #{inod_rcnn_forward.2} parent=31 // pred_fallthru
              _
          $region32: #{inod_rcnn_forward.2} parent=27 // pred_fallthru
            _
          %265 = vnop
        $region28: #{inod_rcnn_forward.2} parent=23 // pred_fallthru
          _
        // Predicated region
        $region66: #{inod_rcnn_forward.2} parent=23 // pred_check
          %p266 = pneg %p56
        $region67: #{inod_rcnn_forward.2} parent=23 // pred_check_branch
          %268 = sbr.rel (%p266) target = $region69
        $region68: #{inod_rcnn_forward.2} parent=23 // pred_region
          %s269 = smul.u32 8, %s10
          %p270 = scmp.lt.s32.totalorder %s269, 15
          %s271 = scalar_select %p270, %s269, 15
          %s272 = smul.addr %s271, 8
          %s273 = scalar_lea.vmem %s1, %s272
          %s274 = smul.u32 8, %s10
        $region69: #{inod_rcnn_forward.2} parent=23 // pred_fallthru
          _
      $region24: #{inod_rcnn_forward.2} parent=5 // pred_fallthru
        _
      %p275 = scmp.le.s32.totalorder 1, %s10
      %p276 = scmp.lt.s32.totalorder %s10, 3
      %p277 = pnand %p275, %p276
      %p278 = pneg %p277
      // Predicated region
      $region70: #{inod_rcnn_forward.2} parent=5 // pred_check
        _
      $region71: #{inod_rcnn_forward.2} parent=5 // pred_check_branch
        %280 = sbr.rel (%p277) target = $region73
      $region72: #{inod_rcnn_forward.2} parent=5 // pred_region
        %s281 = ssub.s32 %s10, 1
        %s282 = sand.u32 %s23, 1
        %s283 = sand.u32 %s23, 1
        %s284 = smul.addr %s283, 64
        %s285 = scalar_lea.vmem [#allocation2], %s284
        // Predicated region
        $region74: #{inod_rcnn_forward.2} parent=72 // pred_check
          %p286 = pneg %p36
        $region75: #{inod_rcnn_forward.2} parent=72 // pred_check_branch
          %288 = sbr.rel (%p286) target = $region77
        $region76: #{inod_rcnn_forward.2} parent=72 // pred_region
          _
        $region77: #{inod_rcnn_forward.2} parent=72 // pred_fallthru
          _
        %s289 = sand.u32 %s23, 1
        %s290 = sand.u32 %s23, 1
        %s291 = smul.addr %s290, 64
        %s292 = scalar_lea.vmem [#allocation2], %s291
        %p293 = pneg %p36
        %p294 = pneg %p33
        %s295 = smul.u32 8, %s15
        %p296 = scmp.lt.s32.totalorder %s295, 15
        %s297 = scalar_select %p296, %s295, 15
        %s298 = smul.addr %s297, 8
        %s299 = scalar_lea.vmem %s1, %s298
        %p300 = pneg %p62
        %p301 = pneg %p59
        %p302 = pneg %p83
        %p303 = pneg %p80
        %p304 = pneg %p104
        %p305 = pneg %p101
        %p306 = pneg %p130
        %p307 = pneg %p127
        %s308 = smul.u32 8, %s15
        %p309 = scmp.lt.s32.totalorder %s308, 15
        %s310 = scalar_select %p309, %s308, 15
        %s311 = smul.addr %s310, 4
        %s312 = scalar_lea.vmem %s4, %s311
        %s313 = smul.u32 8, %s15
        %s314 = smul.u32 8, %s15
        %p315 = scmp.lt.s32.totalorder %s314, 15
        %s316 = scalar_select %p315, %s314, 15
        %s317 = smul.addr %s316, 8
        %s318 = scalar_lea.vmem %s1, %s317
        %s319 = smul.u32 8, %s15
        %s320 = smul.u32 8, %s15
        %p321 = scmp.lt.s32.totalorder %s320, 15
        %s322 = scalar_select %p321, %s320, 15
        %s323 = smul.addr %s322, 4
        %s324 = scalar_lea.vmem %s4, %s323
        %s325 = smul.u32 8, %s15
        %v327 = vld [vmem:[%s285] sm:$0xf]
        %v328 = vld [vmem:[%s285 + $0x4] sm:$0xf]
        %v329 = vld [vmem:[%s285 + $0x8] sm:$0xf]
        %v330 = vld [vmem:[%s285 + $0xc] sm:$0xf]
        %v331 = vld [vmem:[%s285 + $0x10] sm:$0xf]
        %v332 = vld [vmem:[%s285 + $0x14] sm:$0xf]
        %v333 = vld [vmem:[%s285 + $0x18] sm:$0xf]
        %v334 = vld [vmem:[%s285 + $0x1c] sm:$0xf]
        %v335 = vld [vmem:[%s285 + $0x20] sm:$0xf]
        %v336 = vld [vmem:[%s285 + $0x24] sm:$0xf]
        %v337 = vld [vmem:[%s285 + $0x28] sm:$0xf]
        %v338 = vld [vmem:[%s285 + $0x2c] sm:$0xf]
        %v339 = vld [vmem:[%s285 + $0x30] sm:$0xf]
        %v340 = vld [vmem:[%s285 + $0x34] sm:$0xf]
        %v341 = vld [vmem:[%s285 + $0x38] sm:$0xf]
        %v342 = vld [vmem:[%s285 + $0x3c] sm:$0xf]
        %v343 = vld [vmem:[%s2] sm:$0xf]
        %v344 = vld [vmem:[%s2 + $0x4] sm:$0xf]
        %v345 = vld [vmem:[%s2 + $0x8] sm:$0xf]
        %v346 = vld [vmem:[%s2 + $0xc] sm:$0xf]
        %v347 = vld [vmem:[%s2 + $0x10] sm:$0xf]
        %v348 = vld [vmem:[%s2 + $0x14] sm:$0xf]
        %v349 = vld [vmem:[%s3] sm:$0x1]
        %v351 = vperm.slane %v349, 0
        %v369 = vunpack.c.l.b16 %v327
        %v370 = vunpack.c.l.b16 %v328
        %v371 = vunpack.c.l.b16 %v329
        %v372 = vunpack.c.l.b16 %v330
        %v373 = vunpack.c.l.b16 %v331
        %v374 = vunpack.c.l.b16 %v332
        %v375 = vunpack.c.l.b16 %v333
        %v376 = vunpack.c.l.b16 %v334
        %v377 = vunpack.c.l.b16 %v335
        %v378 = vunpack.c.l.b16 %v336
        %v379 = vunpack.c.l.b16 %v337
        %v380 = vunpack.c.l.b16 %v338
        %v381 = vunpack.c.l.b16 %v339
        %v382 = vunpack.c.l.b16 %v340
        %v383 = vunpack.c.l.b16 %v341
        %v384 = vunpack.c.l.b16 %v342
        %v385 = vpack.c.b16 %v370, %v369
        %v386 = vpack.c.b16 %v372, %v371
        %v387 = vpack.c.b16 %v374, %v373
        %v388 = vpack.c.b16 %v376, %v375
        %v389 = vpack.c.b16 %v378, %v377
        %v390 = vpack.c.b16 %v380, %v379
        %v391 = vpack.c.b16 %v382, %v381
        %v392 = vpack.c.b16 %v384, %v383
        %v399 = vunpack.c.l.b16 %v343
        %v400 = vunpack.c.l.b16 %v344
        %v401 = vunpack.c.l.b16 %v345
        %v402 = vunpack.c.l.b16 %v346
        %v403 = vunpack.c.l.b16 %v347
        %v404 = vunpack.c.l.b16 %v348
        %v405 = vpack.c.b16 %v400, %v399
        %v406 = vpack.c.b16 %v402, %v401
        %v407 = vpack.c.b16 %v404, %v403
        %vm411 = vcmask 392192
        %v413 = vsel %vm411, %v385, 0
        %v416 = vsel %vm411, %v386, 0
        %v419 = vsel %vm411, %v387, 0
        %v422 = vsel %vm411, %v388, 0
        %v425 = vsel %vm411, %v389, 0
        %v428 = vsel %vm411, %v390, 0
        %v431 = vsel %vm411, %v391, 0
        %v434 = vsel %vm411, %v392, 0
        %436 = vmatpush.bf16.msra.mxu0 0
        %437 = vmatpush.bf16.msra.mxu0 0
        %438 = vmatpush.bf16.msra.mxu0 0
        %439 = vmatpush.bf16.msra.mxu0 0
        %440 = vmatpush.bf16.msra.mxu0 0
        %441 = vmatpush.bf16.msra.mxu0 %v407
        %442 = vmatpush.bf16.msra.mxu0 %v406
        %443 = vmatpush.bf16.msra.mxu0 %v405
        %444 = vmatmul.bf16.gmra.mxu0 %v413
        %v445 = vpop.f32.mrf.mxu0
        %v446 = vadd.f32 %v351, %v445
        %v447 = vpop.f32.mrf.mxu0
        %v448 = vadd.f32 %v351, %v447
        %449 = vmatmul.bf16.gmra.mxu0 %v416
        %v450 = vpop.f32.mrf.mxu0
        %v451 = vadd.f32 %v351, %v450
        %v452 = vpop.f32.mrf.mxu0
        %v453 = vadd.f32 %v351, %v452
        %454 = vmatmul.bf16.gmra.mxu0 %v419
        %v455 = vpop.f32.mrf.mxu0
        %v456 = vadd.f32 %v351, %v455
        %v457 = vpop.f32.mrf.mxu0
        %v458 = vadd.f32 %v351, %v457
        %459 = vmatmul.bf16.gmra.mxu0 %v422
        %v460 = vpop.f32.mrf.mxu0
        %v461 = vadd.f32 %v351, %v460
        %v462 = vpop.f32.mrf.mxu0
        %v463 = vadd.f32 %v351, %v462
        %464 = vmatmul.bf16.gmra.mxu0 %v425
        %v465 = vpop.f32.mrf.mxu0
        %v466 = vadd.f32 %v351, %v465
        %v467 = vpop.f32.mrf.mxu0
        %v468 = vadd.f32 %v351, %v467
        %469 = vmatmul.bf16.gmra.mxu0 %v428
        %v470 = vpop.f32.mrf.mxu0
        %v471 = vadd.f32 %v351, %v470
        %v472 = vpop.f32.mrf.mxu0
        %v473 = vadd.f32 %v351, %v472
        %474 = vmatmul.bf16.gmra.mxu0 %v431
        %v475 = vpop.f32.mrf.mxu0
        %v476 = vadd.f32 %v351, %v475
        %v477 = vpop.f32.mrf.mxu0
        %v478 = vadd.f32 %v351, %v477
        %479 = vmatmul.bf16.gmra.mxu0 %v434
        %v480 = vpop.f32.mrf.mxu0
        %v481 = vadd.f32 %v351, %v480
        %v482 = vpop.f32.mrf.mxu0
        %v483 = vadd.f32 %v351, %v482
        %484 = vdwg.mxu0
        %v485 = vmax.f32 %v446, 0.0
        %v486 = vmax.f32 %v448, 0.0
        %v487 = vmax.f32 %v451, 0.0
        %v488 = vmax.f32 %v453, 0.0
        %v489 = vmax.f32 %v456, 0.0
        %v490 = vmax.f32 %v458, 0.0
        %v491 = vmax.f32 %v461, 0.0
        %v492 = vmax.f32 %v463, 0.0
        %v493 = vmax.f32 %v466, 0.0
        %v494 = vmax.f32 %v468, 0.0
        %v495 = vmax.f32 %v471, 0.0
        %v496 = vmax.f32 %v473, 0.0
        %v497 = vmax.f32 %v476, 0.0
        %v498 = vmax.f32 %v478, 0.0
        %v499 = vmax.f32 %v481, 0.0
        %v500 = vmax.f32 %v483, 0.0
        %v501 = vld [vmem:[%s318] sm:$0xff]
        %v502 = vld [vmem:[%s318 + $0x8] sm:$0xff]
        %v503 = vld [vmem:[%s318 + $0x10] sm:$0xff]
        %v504 = vld [vmem:[%s318 + $0x18] sm:$0xff]
        %v505 = vld [vmem:[%s318 + $0x20] sm:$0xff]
        %v506 = vld [vmem:[%s318 + $0x28] sm:$0xff]
        %v507 = vld [vmem:[%s318 + $0x30] sm:$0xff]
        %v508 = vld [vmem:[%s318 + $0x38] sm:$0xff]
        %510 = vset.pattern.permute.xlu0 0
        %511 = vperm.xlu0 %510, %v501
        %v512 = vpop.permute.xlu0 %511
        %515 = vset.pattern.permute.xlu0 0
        %516 = vperm.xlu0 %515, %v502
        %v517 = vpop.permute.xlu0 %516
        %520 = vset.pattern.permute.xlu0 0
        %521 = vperm.xlu0 %520, %v503
        %v522 = vpop.permute.xlu0 %521
        %525 = vset.pattern.permute.xlu0 0
        %526 = vperm.xlu0 %525, %v504
        %v527 = vpop.permute.xlu0 %526
        %530 = vset.pattern.permute.xlu0 0
        %531 = vperm.xlu0 %530, %v505
        %v532 = vpop.permute.xlu0 %531
        %535 = vset.pattern.permute.xlu0 0
        %536 = vperm.xlu0 %535, %v506
        %v537 = vpop.permute.xlu0 %536
        %540 = vset.pattern.permute.xlu0 0
        %541 = vperm.xlu0 %540, %v507
        %v542 = vpop.permute.xlu0 %541
        %545 = vset.pattern.permute.xlu0 0
        %546 = vperm.xlu0 %545, %v508
        %v547 = vpop.permute.xlu0 %546
        %v549 = vmul.f32 %v512, %v493
        %v550 = vmul.f32 %v517, %v494
        %v551 = vmul.f32 %v522, %v495
        %v552 = vmul.f32 %v527, %v496
        %v553 = vmul.f32 %v532, %v497
        %v554 = vmul.f32 %v537, %v498
        %v555 = vmul.f32 %v542, %v499
        %v556 = vmul.f32 %v547, %v500
        %v557 = vsub.f32 1.0, %v501
        %v558 = vsub.f32 1.0, %v502
        %v559 = vsub.f32 1.0, %v503
        %v560 = vsub.f32 1.0, %v504
        %v561 = vsub.f32 1.0, %v505
        %v562 = vsub.f32 1.0, %v506
        %v563 = vsub.f32 1.0, %v507
        %v564 = vsub.f32 1.0, %v508
        %566 = vset.pattern.permute.xlu0 0
        %567 = vperm.xlu0 %566, %v557
        %v568 = vpop.permute.xlu0 %567
        %571 = vset.pattern.permute.xlu0 0
        %572 = vperm.xlu0 %571, %v558
        %v573 = vpop.permute.xlu0 %572
        %576 = vset.pattern.permute.xlu0 0
        %577 = vperm.xlu0 %576, %v559
        %v578 = vpop.permute.xlu0 %577
        %581 = vset.pattern.permute.xlu0 0
        %582 = vperm.xlu0 %581, %v560
        %v583 = vpop.permute.xlu0 %582
        %586 = vset.pattern.permute.xlu0 0
        %587 = vperm.xlu0 %586, %v561
        %v588 = vpop.permute.xlu0 %587
        %591 = vset.pattern.permute.xlu0 0
        %592 = vperm.xlu0 %591, %v562
        %v593 = vpop.permute.xlu0 %592
        %596 = vset.pattern.permute.xlu0 0
        %597 = vperm.xlu0 %596, %v563
        %v598 = vpop.permute.xlu0 %597
        %601 = vset.pattern.permute.xlu0 0
        %602 = vperm.xlu0 %601, %v564
        %v603 = vpop.permute.xlu0 %602
        %v605 = vmul.f32 %v568, %v485
        %v606 = vmul.f32 %v573, %v486
        %v607 = vmul.f32 %v578, %v487
        %v608 = vmul.f32 %v583, %v488
        %v609 = vmul.f32 %v588, %v489
        %v610 = vmul.f32 %v593, %v490
        %v611 = vmul.f32 %v598, %v491
        %v612 = vmul.f32 %v603, %v492
        %v613 = vadd.f32 %v549, %v605
        %v614 = vadd.f32 %v550, %v606
        %v615 = vadd.f32 %v551, %v607
        %v616 = vadd.f32 %v552, %v608
        %v617 = vadd.f32 %v553, %v609
        %v618 = vadd.f32 %v554, %v610
        %v619 = vadd.f32 %v555, %v611
        %v620 = vadd.f32 %v556, %v612
        %v621 = vpack.c.bf16 %v613, %v613
        %v622 = vpack.c.bf16 %v614, %v614
        %v623 = vpack.c.bf16 %v615, %v615
        %v624 = vpack.c.bf16 %v616, %v616
        %v625 = vpack.c.bf16 %v617, %v617
        %v626 = vpack.c.bf16 %v618, %v618
        %v627 = vpack.c.bf16 %v619, %v619
        %v628 = vpack.c.bf16 %v620, %v620
        %629 = vst [vmem:[%s324] sm:$0xf] %v621
        %630 = vst [vmem:[%s324 + $0x4] sm:$0xf] %v622
        %631 = vst [vmem:[%s324 + $0x8] sm:$0xf] %v623
        %632 = vst [vmem:[%s324 + $0xc] sm:$0xf] %v624
        %633 = vst [vmem:[%s324 + $0x10] sm:$0xf] %v625
        %634 = vst [vmem:[%s324 + $0x14] sm:$0xf] %v626
        %635 = vst [vmem:[%s324 + $0x18] sm:$0xf] %v627
        %636 = vst [vmem:[%s324 + $0x1c] sm:$0xf] %v628
        %s637 = smul.u32 8, %s15
        %p638 = scmp.lt.s32.totalorder %s637, 15
        %s639 = scalar_select %p638, %s637, 15
        %s640 = smul.addr %s639, 4
        %s641 = scalar_lea.vmem %s4, %s640
        // Predicated region
        $region78: #{inod_rcnn_forward.2} parent=72 // pred_check
          %p642 = pneg %p127
        $region79: #{inod_rcnn_forward.2} parent=72 // pred_check_branch
          %644 = sbr.rel (%p642) target = $region81
        $region80: #{inod_rcnn_forward.2} parent=72 // pred_region
          %s645 = smul.u32 8, %s15
        $region81: #{inod_rcnn_forward.2} parent=72 // pred_fallthru
          _
      $region73: #{inod_rcnn_forward.2} parent=5 // pred_fallthru
        _
      %p646 = scmp.le.s32.totalorder 2, %s10
      // Predicated region
      $region82: #{inod_rcnn_forward.2} parent=5 // pred_check
        %p647 = pneg %p646
      $region83: #{inod_rcnn_forward.2} parent=5 // pred_check_branch
        %649 = sbr.rel (%p647) target = $region85
      $region84: #{inod_rcnn_forward.2} parent=5 // pred_region
        %s650 = ssub.s32 %s10, 2
        // Predicated region
        $region86: #{inod_rcnn_forward.2} parent=84 // pred_check
          %p651 = pneg %p133
        $region87: #{inod_rcnn_forward.2} parent=84 // pred_check_branch
          %653 = sbr.rel (%p651) target = $region89
        $region88: #{inod_rcnn_forward.2} parent=84 // pred_region
          %s654 = smul.u32 8, %s16
          %p655 = scmp.lt.s32.totalorder %s654, 15
          %s656 = scalar_select %p655, %s654, 15
          %s657 = smul.addr %s656, 4
          %s658 = scalar_lea.vmem %s4, %s657
        $region89: #{inod_rcnn_forward.2} parent=84 // pred_fallthru
          _
      $region85: #{inod_rcnn_forward.2} parent=5 // pred_fallthru
        _
    $region6: #{inod_rcnn_forward.2} parent=1 // loop_footer
      %s14 = sadd.s32 1, %s10
    $region7: #{inod_rcnn_forward.2} parent=1 // loop_footer_branch
      %9 = sbr.rel target = $region3
    $region8: #{inod_rcnn_forward.2} parent=1 // loop_exit
      _

// kernel: inod_rcnn_forward.3
$region0: #{inod_rcnn_forward.3}
  #allocation0 [shape = 'u32[]', space=smem, size = 0x4, offset = 0x4, fixed_abs, tag = 'smem constant byte address 0x4 - core index']
  #allocation1 [shape = 'u32[72,128]{1,0:T(1,128)}', space=vmem, size = 0x9000, scoped, tag = 'internal scratch']
  #allocation2 [shape = 'bf16[10,10,128]{2,1,0:T(8,128)(2,1)}', space=vmem, size = 0xa000, scoped, tag = 'scratch operand']
  %s0 = inlined_call_operand.vmem [shape: bf16[2,8,8,128], index: 0, kind: input, shape index: {}]
  %s1 = inlined_call_operand.vmem [shape: f32[2,64,1], index: 1, kind: input, shape index: {}]
  %s2 = inlined_call_operand.vmem [shape: bf16[9,128,128], index: 2, kind: input, shape index: {}]
  %s3 = inlined_call_operand.vmem [shape: f32[1,128], index: 3, kind: input, shape index: {}]
  %s4 = inlined_call_operand.vmem [shape: bf16[128,128], index: 4, kind: input, shape index: {}]
  %s5 = inlined_call_operand.vmem [shape: f32[1,128], index: 5, kind: input, shape index: {}]
  %s6 = inlined_call_operand.hbm [shape: bf16[2,64,128], index: 6, kind: output, shape index: {0}]
  %s7 = inlined_call_operand.vmem [shape: f32[2,1,1], index: 7, kind: output, shape index: {1}]
  %8 = xla_tuple %s6, %s7
  %s9 = sld [smem:[#allocation0]]
  $region65: #{inod_rcnn_forward.3} parent=0
    _
  %s11 = ssub.s32 1, %s9
  %s12 = scalar_select 0, %s11, %s9
  $region1: #{inod_rcnn_forward.3} parent=0
    #allocation3 [shape = 'u8[32768]{0}', space=vmem, size = 0x8000, scoped, tag = 'output window, operand 0']
    #allocation4 [shape = 's32[2]{0}', space=sflag, size = 0x8, scoped, tag = 'scoped memory for inod_rcnn_forward.3']
    %13 = vsyncpa [#allocation4], 0
    %s14 = scalar_lea.sflag [#allocation4], 1
    %15 = vsyncpa %s14, 0
    loop: start=0, step=1, limit=4
    $region2: #{inod_rcnn_forward.3} parent=1 // loop_pre_header
      _
    $region3: #{inod_rcnn_forward.3} parent=1 // loop_header
      %s17 = sphi 0, %s21
      %p18 = scmp.ge.s32.totalorder %s17, 4
      %s27 = sphi 0, %s29
      %s30 = sphi 0, %s27
      %s31 = sphi 0, %s30
      %s47 = sphi 0, %s31
      %s53 = sphi 0, %s55
      %s56 = sphi 0, %s53
      %s57 = sphi 0, %s56
      %s73 = sphi 0, %s57
      %s77 = sphi 0, %s77
      %s79 = sphi 0, %s77
      %s80 = sphi 0, %s79
      %s94 = sphi 0, %s80
      %s98 = sphi 0, %s98
      %s100 = sphi 0, %s98
      %s101 = sphi 0, %s100
      %s115 = sphi 0, %s101
      %s119 = sphi 0, %s119
      %s121 = sphi 0, %s119
      %s122 = sphi 0, %s121
      %s136 = sphi 0, %s122
      %s140 = sphi 0, %s140
      %s142 = sphi 0, %s140
      %s143 = sphi 0, %s142
      %s157 = sphi 0, %s143
      %s163 = sphi 0, %s165
      %s166 = sphi 0, %s163
      %s167 = sphi 0, %s166
      %s183 = sphi 0, %s167
      %s189 = sphi 0, %s191
      %s192 = sphi 0, %s189
      %s193 = sphi 0, %s192
      %s209 = sphi 0, %s193
    $region4: #{inod_rcnn_forward.3} parent=1 // loop_header_branch
      %20 = sbr.rel (%p18) target = $region8
    $region5: #{inod_rcnn_forward.3} parent=1 // loop_body
      %s22 = ssub.s32 %s17, 1
      %s23 = ssub.s32 %s17, 2
      %s24 = sadd.s32 %s17, 1
      %s25 = ssub.s32 %s17, %s24
      %p26 = scmp.eq.s32.totalorder %s25, 0
      %s28 = sadd.s32 %s27, 1
      %s29 = scalar_select %p26, %s27, %s28
      %p32 = pneg %p26
      %p33 = scmp.eq.s32.totalorder %s17, 1
      %p34 = por %p32, %p33
      %p35 = scmp.ne.s32.totalorder %s27, %s30
      %p36 = scmp.eq.s32.totalorder %s17, 0
      %p37 = por %p35, %p36
      %p38 = scmp.ne.s32.totalorder %s27, %s30
      %p39 = scmp.eq.s32.totalorder %s22, 1
      %p40 = por %p38, %p39
      %p41 = scmp.ne.s32.totalorder %s30, %s31
      %p42 = scmp.eq.s32.totalorder %s22, 0
      %p43 = por %p41, %p42
      %p44 = scmp.ne.s32.totalorder %s30, %s31
      %p45 = scmp.eq.s32.totalorder %s23, 1
      %p46 = por %p44, %p45
      %p48 = scmp.ne.s32.totalorder %s31, %s47
      %p49 = scmp.eq.s32.totalorder %s23, 0
      %p50 = por %p48, %p49
      %s51 = ssub.s32 %s17, %s24
      %p52 = scmp.eq.s32.totalorder %s51, 0
      %s54 = sadd.s32 %s53, 1
      %s55 = scalar_select %p52, %s53, %s54
      %p58 = pneg %p52
      %p59 = scmp.eq.s32.totalorder %s17, 1
      %p60 = por %p58, %p59
      %p61 = scmp.ne.s32.totalorder %s53, %s56
      %p62 = scmp.eq.s32.totalorder %s17, 0
      %p63 = por %p61, %p62
      %p64 = scmp.ne.s32.totalorder %s53, %s56
      %p65 = scmp.eq.s32.totalorder %s22, 1
      %p66 = por %p64, %p65
      %p67 = scmp.ne.s32.totalorder %s56, %s57
      %p68 = scmp.eq.s32.totalorder %s22, 0
      %p69 = por %p67, %p68
      %p70 = scmp.ne.s32.totalorder %s56, %s57
      %p71 = scmp.eq.s32.totalorder %s23, 1
      %p72 = por %p70, %p71
      %p74 = scmp.ne.s32.totalorder %s57, %s73
      %p75 = scmp.eq.s32.totalorder %s23, 0
      %p76 = por %p74, %p75
      %s78 = sadd.s32 %s77, 1
      %p81 = scmp.eq.s32.totalorder %s17, 1
      %p82 = scmp.ne.s32.totalorder %s77, %s79
      %p83 = scmp.eq.s32.totalorder %s17, 0
      %p84 = por %p82, %p83
      %p85 = scmp.ne.s32.totalorder %s77, %s79
      %p86 = scmp.eq.s32.totalorder %s22, 1
      %p87 = por %p85, %p86
      %p88 = scmp.ne.s32.totalorder %s79, %s80
      %p89 = scmp.eq.s32.totalorder %s22, 0
      %p90 = por %p88, %p89
      %p91 = scmp.ne.s32.totalorder %s79, %s80
      %p92 = scmp.eq.s32.totalorder %s23, 1
      %p93 = por %p91, %p92
      %p95 = scmp.ne.s32.totalorder %s80, %s94
      %p96 = scmp.eq.s32.totalorder %s23, 0
      %p97 = por %p95, %p96
      %s99 = sadd.s32 %s98, 1
      %p102 = scmp.eq.s32.totalorder %s17, 1
      %p103 = scmp.ne.s32.totalorder %s98, %s100
      %p104 = scmp.eq.s32.totalorder %s17, 0
      %p105 = por %p103, %p104
      %p106 = scmp.ne.s32.totalorder %s98, %s100
      %p107 = scmp.eq.s32.totalorder %s22, 1
      %p108 = por %p106, %p107
      %p109 = scmp.ne.s32.totalorder %s100, %s101
      %p110 = scmp.eq.s32.totalorder %s22, 0
      %p111 = por %p109, %p110
      %p112 = scmp.ne.s32.totalorder %s100, %s101
      %p113 = scmp.eq.s32.totalorder %s23, 1
      %p114 = por %p112, %p113
      %p116 = scmp.ne.s32.totalorder %s101, %s115
      %p117 = scmp.eq.s32.totalorder %s23, 0
      %p118 = por %p116, %p117
      %s120 = sadd.s32 %s119, 1
      %p123 = scmp.eq.s32.totalorder %s17, 1
      %p124 = scmp.ne.s32.totalorder %s119, %s121
      %p125 = scmp.eq.s32.totalorder %s17, 0
      %p126 = por %p124, %p125
      %p127 = scmp.ne.s32.totalorder %s119, %s121
      %p128 = scmp.eq.s32.totalorder %s22, 1
      %p129 = por %p127, %p128
      %p130 = scmp.ne.s32.totalorder %s121, %s122
      %p131 = scmp.eq.s32.totalorder %s22, 0
      %p132 = por %p130, %p131
      %p133 = scmp.ne.s32.totalorder %s121, %s122
      %p134 = scmp.eq.s32.totalorder %s23, 1
      %p135 = por %p133, %p134
      %p137 = scmp.ne.s32.totalorder %s122, %s136
      %p138 = scmp.eq.s32.totalorder %s23, 0
      %p139 = por %p137, %p138
      %s141 = sadd.s32 %s140, 1
      %p144 = scmp.eq.s32.totalorder %s17, 1
      %p145 = scmp.ne.s32.totalorder %s140, %s142
      %p146 = scmp.eq.s32.totalorder %s17, 0
      %p147 = por %p145, %p146
      %p148 = scmp.ne.s32.totalorder %s140, %s142
      %p149 = scmp.eq.s32.totalorder %s22, 1
      %p150 = por %p148, %p149
      %p151 = scmp.ne.s32.totalorder %s142, %s143
      %p152 = scmp.eq.s32.totalorder %s22, 0
      %p153 = por %p151, %p152
      %p154 = scmp.ne.s32.totalorder %s142, %s143
      %p155 = scmp.eq.s32.totalorder %s23, 1
      %p156 = por %p154, %p155
      %p158 = scmp.ne.s32.totalorder %s143, %s157
      %p159 = scmp.eq.s32.totalorder %s23, 0
      %p160 = por %p158, %p159
      %s161 = ssub.s32 %s17, %s24
      %p162 = scmp.eq.s32.totalorder %s161, 0
      %s164 = sadd.s32 %s163, 1
      %s165 = scalar_select %p162, %s163, %s164
      %p168 = pneg %p162
      %p169 = scmp.eq.s32.totalorder %s17, 1
      %p170 = por %p168, %p169
      %p171 = scmp.ne.s32.totalorder %s163, %s166
      %p172 = scmp.eq.s32.totalorder %s17, 0
      %p173 = por %p171, %p172
      %p174 = scmp.ne.s32.totalorder %s163, %s166
      %p175 = scmp.eq.s32.totalorder %s22, 1
      %p176 = por %p174, %p175
      %p177 = scmp.ne.s32.totalorder %s166, %s167
      %p178 = scmp.eq.s32.totalorder %s22, 0
      %p179 = por %p177, %p178
      %p180 = scmp.ne.s32.totalorder %s166, %s167
      %p181 = scmp.eq.s32.totalorder %s23, 1
      %p182 = por %p180, %p181
      %p184 = scmp.ne.s32.totalorder %s167, %s183
      %p185 = scmp.eq.s32.totalorder %s23, 0
      %p186 = por %p184, %p185
      %s187 = ssub.s32 %s17, %s24
      %p188 = scmp.eq.s32.totalorder %s187, 0
      %s190 = sadd.s32 %s189, 1
      %s191 = scalar_select %p188, %s189, %s190
      %p194 = pneg %p188
      %p195 = scmp.eq.s32.totalorder %s17, 1
      %p196 = por %p194, %p195
      %p197 = scmp.ne.s32.totalorder %s189, %s192
      %p198 = scmp.eq.s32.totalorder %s17, 0
      %p199 = por %p197, %p198
      %p200 = scmp.ne.s32.totalorder %s189, %s192
      %p201 = scmp.eq.s32.totalorder %s22, 1
      %p202 = por %p200, %p201
      %p203 = scmp.ne.s32.totalorder %s192, %s193
      %p204 = scmp.eq.s32.totalorder %s22, 0
      %p205 = por %p203, %p204
      %p206 = scmp.ne.s32.totalorder %s192, %s193
      %p207 = scmp.eq.s32.totalorder %s23, 1
      %p208 = por %p206, %p207
      %p210 = scmp.ne.s32.totalorder %s193, %s209
      %p211 = scmp.eq.s32.totalorder %s23, 0
      %p212 = por %p210, %p211
      %p213 = scmp.le.s32.totalorder 1, %s17
      %p214 = scmp.lt.s32.totalorder %s17, 3
      %p215 = pnand %p213, %p214
      %p216 = pneg %p215
      // Predicated region
      $region9: #{inod_rcnn_forward.3} parent=5 // pred_check
        _
      $region10: #{inod_rcnn_forward.3} parent=5 // pred_check_branch
        %218 = sbr.rel (%p215) target = $region12
      $region11: #{inod_rcnn_forward.3} parent=5 // pred_region
        %s219 = ssub.s32 %s17, 1
        // Predicated region
        $region13: #{inod_rcnn_forward.3} parent=11 // pred_check
          %p220 = pneg %p90
        $region14: #{inod_rcnn_forward.3} parent=11 // pred_check_branch
          %222 = sbr.rel (%p220) target = $region16
        $region15: #{inod_rcnn_forward.3} parent=11 // pred_region
          _
        $region16: #{inod_rcnn_forward.3} parent=11 // pred_fallthru
          _
        // Predicated region
        $region17: #{inod_rcnn_forward.3} parent=11 // pred_check
          %p223 = pneg %p111
        $region18: #{inod_rcnn_forward.3} parent=11 // pred_check_branch
          %225 = sbr.rel (%p223) target = $region20
        $region19: #{inod_rcnn_forward.3} parent=11 // pred_region
          _
        $region20: #{inod_rcnn_forward.3} parent=11 // pred_fallthru
          _
        // Predicated region
        $region21: #{inod_rcnn_forward.3} parent=11 // pred_check
          %p226 = pneg %p132
        $region22: #{inod_rcnn_forward.3} parent=11 // pred_check_branch
          %228 = sbr.rel (%p226) target = $region24
        $region23: #{inod_rcnn_forward.3} parent=11 // pred_region
          _
        $region24: #{inod_rcnn_forward.3} parent=11 // pred_fallthru
          _
        // Predicated region
        $region25: #{inod_rcnn_forward.3} parent=11 // pred_check
          %p229 = pneg %p153
        $region26: #{inod_rcnn_forward.3} parent=11 // pred_check_branch
          %231 = sbr.rel (%p229) target = $region28
        $region27: #{inod_rcnn_forward.3} parent=11 // pred_region
          _
        $region28: #{inod_rcnn_forward.3} parent=11 // pred_fallthru
          _
      $region12: #{inod_rcnn_forward.3} parent=5 // pred_fallthru
        _
      %p232 = scmp.lt.s32.totalorder %s17, 2
      // Predicated region
      $region29: #{inod_rcnn_forward.3} parent=5 // pred_check
        %p233 = pneg %p232
      $region30: #{inod_rcnn_forward.3} parent=5 // pred_check_branch
        %235 = sbr.rel (%p233) target = $region32
      $region31: #{inod_rcnn_forward.3} parent=5 // pred_region
        // Predicated region
        $region33: #{inod_rcnn_forward.3} parent=31 // pred_check
          %p236 = pneg %p37
        $region34: #{inod_rcnn_forward.3} parent=31 // pred_check_branch
          %238 = sbr.rel (%p236) target = $region36
        $region35: #{inod_rcnn_forward.3} parent=31 // pred_region
          %p239 = scmp.lt.s32.totalorder %s17, 1
          %s240 = scalar_select %p239, %s17, 1
          %s241 = smul.addr %s240, 8
          %s242 = smul.addr %s241, 4
          %s243 = scalar_lea.vmem %s0, %s242
        $region36: #{inod_rcnn_forward.3} parent=31 // pred_fallthru
          _
        // Predicated region
        $region37: #{inod_rcnn_forward.3} parent=31 // pred_check
          %p244 = pneg %p63
        $region38: #{inod_rcnn_forward.3} parent=31 // pred_check_branch
          %246 = sbr.rel (%p244) target = $region40
        $region39: #{inod_rcnn_forward.3} parent=31 // pred_region
          %p247 = scmp.lt.s32.totalorder %s17, 1
          %s248 = scalar_select %p247, %s17, 1
          %s249 = smul.addr %s248, 8
          %s250 = smul.addr %s249, 8
          %s251 = scalar_lea.vmem %s1, %s250
        $region40: #{inod_rcnn_forward.3} parent=31 // pred_fallthru
          _
      $region32: #{inod_rcnn_forward.3} parent=5 // pred_fallthru
        _
      %p252 = scmp.le.s32.totalorder 1, %s17
      %p253 = scmp.lt.s32.totalorder %s17, 3
      %p254 = pnand %p252, %p253
      %p255 = pneg %p254
      // Predicated region
      $region41: #{inod_rcnn_forward.3} parent=5 // pred_check
        _
      $region42: #{inod_rcnn_forward.3} parent=5 // pred_check_branch
        %257 = sbr.rel (%p254) target = $region44
      $region43: #{inod_rcnn_forward.3} parent=5 // pred_region
        %s258 = ssub.s32 %s17, 1
        %p259 = scmp.lt.s32.totalorder %s22, 1
        %s260 = scalar_select %p259, %s22, 1
        %s261 = smul.addr %s260, 8
        %s262 = smul.addr %s261, 4
        %s263 = scalar_lea.vmem %s0, %s262
        %p264 = pneg %p43
        %p265 = pneg %p40
        %p266 = scmp.lt.s32.totalorder %s22, 1
        %s267 = scalar_select %p266, %s22, 1
        %s268 = smul.addr %s267, 8
        %s269 = smul.addr %s268, 8
        %s270 = scalar_lea.vmem %s1, %s269
        %p271 = pneg %p69
        %p272 = pneg %p66
        %p273 = pneg %p90
        %p274 = pneg %p87
        %p275 = pneg %p111
        %p276 = pneg %p108
        %p277 = pneg %p132
        %p278 = pneg %p129
        %p279 = pneg %p153
        %p280 = pneg %p150
        %p281 = pneg %p179
        %p282 = pneg %p176
        %s283 = sand.u32 %s166, 1
        %s284 = scalar_lea.sflag [#allocation4], %s283
        %s285 = sand.u32 %s166, 1
        %s286 = smul.addr %s285, 32
        %s287 = scalar_lea.vmem [#allocation3], %s286
        %p288 = pneg %p205
        %p289 = pneg %p202
        %p290 = scmp.lt.s32.totalorder %s22, 1
        %s291 = scalar_select %p290, %s22, 1
        %s292 = scalar_lea.vmem %s7, %s291
        %p293 = scmp.lt.s32.totalorder %s22, 1
        %s294 = scalar_select %p293, %s22, 1
        %s295 = smul.addr %s294, 8
        %s296 = smul.addr %s295, 4
        %s297 = scalar_lea.vmem %s0, %s296
        %p298 = scmp.lt.s32.totalorder %s22, 1
        %s299 = scalar_select %p298, %s22, 1
        %s300 = smul.addr %s299, 8
        %s301 = smul.addr %s300, 8
        %s302 = scalar_lea.vmem %s1, %s301
        %p303 = scmp.lt.s32.totalorder %s22, 1
        %s304 = scalar_select %p303, %s22, 1
        %s305 = scalar_lea.vmem %s7, %s304
        %307 = vst [vmem:[#allocation2] sm:$0xf] 0
        %308 = vst [vmem:[#allocation2 + $0x4] sm:$0x1] 0
        %309 = vst [vmem:[#allocation2 + $0x8] sm:$0xf] 0
        %310 = vst [vmem:[#allocation2 + $0xc] sm:$0x1] 0
        %311 = vst [vmem:[#allocation2 + $0x10] sm:$0xf] 0
        %312 = vst [vmem:[#allocation2 + $0x14] sm:$0x1] 0
        %313 = vst [vmem:[#allocation2 + $0x18] sm:$0xf] 0
        %314 = vst [vmem:[#allocation2 + $0x1c] sm:$0x1] 0
        %315 = vst [vmem:[#allocation2 + $0x20] sm:$0xf] 0
        %316 = vst [vmem:[#allocation2 + $0x24] sm:$0x1] 0
        %317 = vst [vmem:[#allocation2 + $0x28] sm:$0xf] 0
        %318 = vst [vmem:[#allocation2 + $0x2c] sm:$0x1] 0
        %319 = vst [vmem:[#allocation2 + $0x30] sm:$0xf] 0
        %320 = vst [vmem:[#allocation2 + $0x34] sm:$0x1] 0
        %321 = vst [vmem:[#allocation2 + $0x38] sm:$0xf] 0
        %322 = vst [vmem:[#allocation2 + $0x3c] sm:$0x1] 0
        %323 = vst [vmem:[#allocation2 + $0x40] sm:$0xf] 0
        %324 = vst [vmem:[#allocation2 + $0x44] sm:$0x1] 0
        %325 = vst [vmem:[#allocation2 + $0x48] sm:$0xf] 0
        %326 = vst [vmem:[#allocation2 + $0x4c] sm:$0x1] 0
        %v327 = vld [vmem:[%s297] sm:$0xf]
        %v328 = vld [vmem:[%s297 + $0x4] sm:$0xf]
        %v329 = vld [vmem:[%s297 + $0x8] sm:$0xf]
        %v330 = vld [vmem:[%s297 + $0xc] sm:$0xf]
        %v331 = vld [vmem:[%s297 + $0x10] sm:$0xf]
        %v332 = vld [vmem:[%s297 + $0x14] sm:$0xf]
        %v333 = vld [vmem:[%s297 + $0x18] sm:$0xf]
        %v334 = vld [vmem:[%s297 + $0x1c] sm:$0xf]
        %v336 = vshrl.u32 %v327, 16
        %v338 = vrot.slane %v336, 7
        %v339 = vshll.u32 %v327, 16
        %v341 = vor.u32 %v338, %v339
        %v342 = vrot.slane %v338, 4
        %v344 = vshrl.u32 %v328, 16
        %v346 = vrot.slane %v344, 7
        %v347 = vshll.u32 %v328, 16
        %v349 = vor.u32 %v346, %v347
        %v350 = vrot.slane %v346, 4
        %v352 = vshrl.u32 %v329, 16
        %v354 = vrot.slane %v352, 7
        %v355 = vshll.u32 %v329, 16
        %v357 = vor.u32 %v354, %v355
        %v358 = vrot.slane %v354, 4
        %v360 = vshrl.u32 %v330, 16
        %v362 = vrot.slane %v360, 7
        %v363 = vshll.u32 %v330, 16
        %v365 = vor.u32 %v362, %v363
        %v366 = vrot.slane %v362, 4
        %v368 = vshrl.u32 %v331, 16
        %v370 = vrot.slane %v368, 7
        %v371 = vshll.u32 %v331, 16
        %v373 = vor.u32 %v370, %v371
        %v374 = vrot.slane %v370, 4
        %v376 = vshrl.u32 %v332, 16
        %v378 = vrot.slane %v376, 7
        %v379 = vshll.u32 %v332, 16
        %v381 = vor.u32 %v378, %v379
        %v382 = vrot.slane %v378, 4
        %v384 = vshrl.u32 %v333, 16
        %v386 = vrot.slane %v384, 7
        %v387 = vshll.u32 %v333, 16
        %v389 = vor.u32 %v386, %v387
        %v390 = vrot.slane %v386, 4
        %v392 = vshrl.u32 %v334, 16
        %v394 = vrot.slane %v392, 7
        %v395 = vshll.u32 %v334, 16
        %v397 = vor.u32 %v394, %v395
        %v398 = vrot.slane %v394, 4
        %s415 = scalar_lea.vmem [#allocation2], 8
        %vm416 = vcmask 1043456
        %vm417 = vsmask.f32 7938
        %vm418 = vmand %vm416, %vm417
        %v419 = vld [vmem:[%s415] sm:$0xf]
        %v420 = vsel %vm418, %v341, %v419
        %421 = vst [vmem:[%s415] sm:$0xf] %v420
        %vm422 = vcmask 1040384
        %vm423 = vsmask.f32 256
        %vm424 = vmand %vm422, %vm423
        %v425 = vld [vmem:[%s415 + $0x4] sm:$0x1]
        %v426 = vsel %vm424, %v342, %v425
        %427 = vst [vmem:[%s415 + $0x4] sm:$0x1] %v426
        %v428 = vld [vmem:[%s415 + $0x8] sm:$0xf]
        %v429 = vsel %vm418, %v349, %v428
        %430 = vst [vmem:[%s415 + $0x8] sm:$0xf] %v429
        %v431 = vld [vmem:[%s415 + $0xc] sm:$0x1]
        %v432 = vsel %vm424, %v350, %v431
        %433 = vst [vmem:[%s415 + $0xc] sm:$0x1] %v432
        %v434 = vld [vmem:[%s415 + $0x10] sm:$0xf]
        %v435 = vsel %vm418, %v357, %v434
        %436 = vst [vmem:[%s415 + $0x10] sm:$0xf] %v435
        %v437 = vld [vmem:[%s415 + $0x14] sm:$0x1]
        %v438 = vsel %vm424, %v358, %v437
        %439 = vst [vmem:[%s415 + $0x14] sm:$0x1] %v438
        %v440 = vld [vmem:[%s415 + $0x18] sm:$0xf]
        %v441 = vsel %vm418, %v365, %v440
        %442 = vst [vmem:[%s415 + $0x18] sm:$0xf] %v441
        %v443 = vld [vmem:[%s415 + $0x1c] sm:$0x1]
        %v444 = vsel %vm424, %v366, %v443
        %445 = vst [vmem:[%s415 + $0x1c] sm:$0x1] %v444
        %v446 = vld [vmem:[%s415 + $0x20] sm:$0xf]
        %v447 = vsel %vm418, %v373, %v446
        %448 = vst [vmem:[%s415 + $0x20] sm:$0xf] %v447
        %v449 = vld [vmem:[%s415 + $0x24] sm:$0x1]
        %v450 = vsel %vm424, %v374, %v449
        %451 = vst [vmem:[%s415 + $0x24] sm:$0x1] %v450
        %v452 = vld [vmem:[%s415 + $0x28] sm:$0xf]
        %v453 = vsel %vm418, %v381, %v452
        %454 = vst [vmem:[%s415 + $0x28] sm:$0xf] %v453
        %v455 = vld [vmem:[%s415 + $0x2c] sm:$0x1]
        %v456 = vsel %vm424, %v382, %v455
        %457 = vst [vmem:[%s415 + $0x2c] sm:$0x1] %v456
        %v458 = vld [vmem:[%s415 + $0x30] sm:$0xf]
        %v459 = vsel %vm418, %v389, %v458
        %460 = vst [vmem:[%s415 + $0x30] sm:$0xf] %v459
        %v461 = vld [vmem:[%s415 + $0x34] sm:$0x1]
        %v462 = vsel %vm424, %v390, %v461
        %463 = vst [vmem:[%s415 + $0x34] sm:$0x1] %v462
        %v464 = vld [vmem:[%s415 + $0x38] sm:$0xf]
        %v465 = vsel %vm418, %v397, %v464
        %466 = vst [vmem:[%s415 + $0x38] sm:$0xf] %v465
        %v467 = vld [vmem:[%s415 + $0x3c] sm:$0x1]
        %v468 = vsel %vm424, %v398, %v467
        %469 = vst [vmem:[%s415 + $0x3c] sm:$0x1] %v468
        %v470 = vld [vmem:[#allocation2] sm:$0xf]
        %v471 = vld [vmem:[#allocation2 + $0x8] sm:$0xf]
        %v472 = vld [vmem:[#allocation2 + $0x10] sm:$0xf]
        %v473 = vld [vmem:[#allocation2 + $0x18] sm:$0xf]
        %v474 = vld [vmem:[#allocation2 + $0x20] sm:$0xf]
        %v475 = vld [vmem:[#allocation2 + $0x28] sm:$0xf]
        %v476 = vld [vmem:[#allocation2 + $0x30] sm:$0xf]
        %v477 = vld [vmem:[#allocation2 + $0x38] sm:$0xf]
        %v478 = vld [vmem:[#allocation2 + $0x40] sm:$0xf]
        %v479 = vld [vmem:[#allocation2 + $0x48] sm:$0xf]
        %v480 = vld [vmem:[%s2] sm:$0xf]
        %v481 = vld [vmem:[%s2 + $0x4] sm:$0xf]
        %v482 = vld [vmem:[%s2 + $0x8] sm:$0xf]
        %v483 = vld [vmem:[%s2 + $0xc] sm:$0xf]
        %v484 = vld [vmem:[%s2 + $0x10] sm:$0xf]
        %v485 = vld [vmem:[%s2 + $0x14] sm:$0xf]
        %v486 = vld [vmem:[%s2 + $0x18] sm:$0xf]
        %v487 = vld [vmem:[%s2 + $0x1c] sm:$0xf]
        %v488 = vld [vmem:[%s2 + $0x20] sm:$0xf]
        %v489 = vld [vmem:[%s2 + $0x24] sm:$0xf]
        %v490 = vld [vmem:[%s2 + $0x28] sm:$0xf]
        %v491 = vld [vmem:[%s2 + $0x2c] sm:$0xf]
        %v492 = vld [vmem:[%s2 + $0x30] sm:$0xf]
        %v493 = vld [vmem:[%s2 + $0x34] sm:$0xf]
        %v494 = vld [vmem:[%s2 + $0x38] sm:$0xf]
        %v495 = vld [vmem:[%s2 + $0x3c] sm:$0xf]
        %s496 = scalar_lea.vmem %s2, 192
        %v497 = vld [vmem:[%s496] sm:$0xf]
        %v498 = vld [vmem:[%s496 + $0x4] sm:$0xf]
        %v499 = vld [vmem:[%s496 + $0x8] sm:$0xf]
        %v500 = vld [vmem:[%s496 + $0xc] sm:$0xf]
        %v501 = vld [vmem:[%s496 + $0x10] sm:$0xf]
        %v502 = vld [vmem:[%s496 + $0x14] sm:$0xf]
        %v503 = vld [vmem:[%s496 + $0x18] sm:$0xf]
        %v504 = vld [vmem:[%s496 + $0x1c] sm:$0xf]
        %v505 = vld [vmem:[%s496 + $0x20] sm:$0xf]
        %v506 = vld [vmem:[%s496 + $0x24] sm:$0xf]
        %v507 = vld [vmem:[%s496 + $0x28] sm:$0xf]
        %v508 = vld [vmem:[%s496 + $0x2c] sm:$0xf]
        %v509 = vld [vmem:[%s496 + $0x30] sm:$0xf]
        %v510 = vld [vmem:[%s496 + $0x34] sm:$0xf]
        %v511 = vld [vmem:[%s496 + $0x38] sm:$0xf]
        %v512 = vld [vmem:[%s496 + $0x3c] sm:$0xf]
        %v521 = vunpack.c.l.b16 %v471
        %v522 = vunpack.c.l.b16 %v472
        %v523 = vunpack.c.l.b16 %v473
        %v524 = vunpack.c.l.b16 %v474
        %v525 = vunpack.c.l.b16 %v475
        %v526 = vunpack.c.l.b16 %v476
        %v527 = vunpack.c.l.b16 %v477
        %v528 = vunpack.c.l.b16 %v478
        %v529 = vpack.c.b16 %v522, %v521
        %v530 = vpack.c.b16 %v524, %v523
        %v531 = vpack.c.b16 %v526, %v525
        %v532 = vpack.c.b16 %v528, %v527
        %v553 = vunpack.c.l.b16 %v497
        %v554 = vunpack.c.l.b16 %v498
        %v555 = vunpack.c.l.b16 %v499
        %v556 = vunpack.c.l.b16 %v500
        %v557 = vunpack.c.l.b16 %v501
        %v558 = vunpack.c.l.b16 %v502
        %v559 = vunpack.c.l.b16 %v503
        %v560 = vunpack.c.l.b16 %v504
        %v561 = vunpack.c.l.b16 %v505
        %v562 = vunpack.c.l.b16 %v506
        %v563 = vunpack.c.l.b16 %v507
        %v564 = vunpack.c.l.b16 %v508
        %v565 = vunpack.c.l.b16 %v509
        %v566 = vunpack.c.l.b16 %v510
        %v567 = vunpack.c.l.b16 %v511
        %v568 = vunpack.c.l.b16 %v512
        %v569 = vpack.c.b16 %v554, %v553
        %v570 = vpack.c.b16 %v556, %v555
        %v571 = vpack.c.b16 %v558, %v557
        %v572 = vpack.c.b16 %v560, %v559
        %v573 = vpack.c.b16 %v562, %v561
        %v574 = vpack.c.b16 %v564, %v563
        %v575 = vpack.c.b16 %v566, %v565
        %v576 = vpack.c.b16 %v568, %v567
        %585 = vmatpush.bf16.msra.mxu0 %v576
        %586 = vmatpush.bf16.msra.mxu0 %v575
        %587 = vmatpush.bf16.msra.mxu0 %v574
        %588 = vmatpush.bf16.msra.mxu0 %v573
        %589 = vmatpush.bf16.msra.mxu0 %v572
        %590 = vmatpush.bf16.msra.mxu0 %v571
        %591 = vmatpush.bf16.msra.mxu0 %v570
        %592 = vmatpush.bf16.msra.mxu0 %v569
        %593 = vmatmul.bf16.gmra.mxu0 %v529
        %v594 = vpop.f32.mrf.mxu0
        %v595 = vadd.f32 0.0, %v594
        %v596 = vpop.f32.mrf.mxu0
        %v597 = vadd.f32 0.0, %v596
        %598 = vmatmul.bf16.gmra.mxu0 %v530
        %v599 = vpop.f32.mrf.mxu0
        %v600 = vadd.f32 0.0, %v599
        %v601 = vpop.f32.mrf.mxu0
        %v602 = vadd.f32 0.0, %v601
        %603 = vmatmul.bf16.gmra.mxu0 %v531
        %v604 = vpop.f32.mrf.mxu0
        %v605 = vadd.f32 0.0, %v604
        %v606 = vpop.f32.mrf.mxu0
        %v607 = vadd.f32 0.0, %v606
        %608 = vmatmul.bf16.gmra.mxu0 %v532
        %v609 = vpop.f32.mrf.mxu0
        %v610 = vadd.f32 0.0, %v609
        %v611 = vpop.f32.mrf.mxu0
        %v612 = vadd.f32 0.0, %v611
        %613 = vdwg.mxu0
        %v615 = vunpack.c.l.b16 %v470
        %v616 = vpack.c.b16 %v521, %v615
        %v617 = vpack.c.b16 %v523, %v522
        %v618 = vpack.c.b16 %v525, %v524
        %v619 = vpack.c.b16 %v527, %v526
        %v640 = vunpack.c.l.b16 %v480
        %v641 = vunpack.c.l.b16 %v481
        %v642 = vunpack.c.l.b16 %v482
        %v643 = vunpack.c.l.b16 %v483
        %v644 = vunpack.c.l.b16 %v484
        %v645 = vunpack.c.l.b16 %v485
        %v646 = vunpack.c.l.b16 %v486
        %v647 = vunpack.c.l.b16 %v487
        %v648 = vunpack.c.l.b16 %v488
        %v649 = vunpack.c.l.b16 %v489
        %v650 = vunpack.c.l.b16 %v490
        %v651 = vunpack.c.l.b16 %v491
        %v652 = vunpack.c.l.b16 %v492
        %v653 = vunpack.c.l.b16 %v493
        %v654 = vunpack.c.l.b16 %v494
        %v655 = vunpack.c.l.b16 %v495
        %v656 = vpack.c.b16 %v641, %v640
        %v657 = vpack.c.b16 %v643, %v642
        %v658 = vpack.c.b16 %v645, %v644
        %v659 = vpack.c.b16 %v647, %v646
        %v660 = vpack.c.b16 %v649, %v648
        %v661 = vpack.c.b16 %v651, %v650
        %v662 = vpack.c.b16 %v653, %v652
        %v663 = vpack.c.b16 %v655, %v654
        %672 = vmatpush.bf16.msra.mxu0 %v663
        %673 = vmatpush.bf16.msra.mxu0 %v662
        %674 = vmatpush.bf16.msra.mxu0 %v661
        %675 = vmatpush.bf16.msra.mxu0 %v660
        %676 = vmatpush.bf16.msra.mxu0 %v659
        %677 = vmatpush.bf16.msra.mxu0 %v658
        %678 = vmatpush.bf16.msra.mxu0 %v657
        %679 = vmatpush.bf16.msra.mxu0 %v656
        %680 = vmatmul.bf16.gmra.mxu0 %v616
        %v681 = vpop.f32.mrf.mxu0
        %v682 = vadd.f32 %v595, %v681
        %v683 = vpop.f32.mrf.mxu0
        %v684 = vadd.f32 %v597, %v683
        %685 = vmatmul.bf16.gmra.mxu0 %v617
        %v686 = vpop.f32.mrf.mxu0
        %v687 = vadd.f32 %v600, %v686
        %v688 = vpop.f32.mrf.mxu0
        %v689 = vadd.f32 %v602, %v688
        %690 = vmatmul.bf16.gmra.mxu0 %v618
        %v691 = vpop.f32.mrf.mxu0
        %v692 = vadd.f32 %v605, %v691
        %v693 = vpop.f32.mrf.mxu0
        %v694 = vadd.f32 %v607, %v693
        %695 = vmatmul.bf16.gmra.mxu0 %v619
        %v696 = vpop.f32.mrf.mxu0
        %v697 = vadd.f32 %v610, %v696
        %v698 = vpop.f32.mrf.mxu0
        %v699 = vadd.f32 %v612, %v698
        %700 = vdwg.mxu0
        %s701 = scalar_lea.vmem %s2, 384
        %v702 = vld [vmem:[%s701] sm:$0xf]
        %v703 = vld [vmem:[%s701 + $0x4] sm:$0xf]
        %v704 = vld [vmem:[%s701 + $0x8] sm:$0xf]
        %v705 = vld [vmem:[%s701 + $0xc] sm:$0xf]
        %v706 = vld [vmem:[%s701 + $0x10] sm:$0xf]
        %v707 = vld [vmem:[%s701 + $0x14] sm:$0xf]
        %v708 = vld [vmem:[%s701 + $0x18] sm:$0xf]
        %v709 = vld [vmem:[%s701 + $0x1c] sm:$0xf]
        %v710 = vld [vmem:[%s701 + $0x20] sm:$0xf]
        %v711 = vld [vmem:[%s701 + $0x24] sm:$0xf]
        %v712 = vld [vmem:[%s701 + $0x28] sm:$0xf]
        %v713 = vld [vmem:[%s701 + $0x2c] sm:$0xf]
        %v714 = vld [vmem:[%s701 + $0x30] sm:$0xf]
        %v715 = vld [vmem:[%s701 + $0x34] sm:$0xf]
        %v716 = vld [vmem:[%s701 + $0x38] sm:$0xf]
        %v717 = vld [vmem:[%s701 + $0x3c] sm:$0xf]
        %v719 = vunpack.c.l.b16 %v479
        %v720 = vpack.c.b16 %v719, %v528
        %v738 = vunpack.c.l.b16 %v702
        %v739 = vunpack.c.l.b16 %v703
        %v740 = vunpack.c.l.b16 %v704
        %v741 = vunpack.c.l.b16 %v705
        %v742 = vunpack.c.l.b16 %v706
        %v743 = vunpack.c.l.b16 %v707
        %v744 = vunpack.c.l.b16 %v708
        %v745 = vunpack.c.l.b16 %v709
        %v746 = vunpack.c.l.b16 %v710
        %v747 = vunpack.c.l.b16 %v711
        %v748 = vunpack.c.l.b16 %v712
        %v749 = vunpack.c.l.b16 %v713
        %v750 = vunpack.c.l.b16 %v714
        %v751 = vunpack.c.l.b16 %v715
        %v752 = vunpack.c.l.b16 %v716
        %v753 = vunpack.c.l.b16 %v717
        %v754 = vpack.c.b16 %v739, %v738
        %v755 = vpack.c.b16 %v741, %v740
        %v756 = vpack.c.b16 %v743, %v742
        %v757 = vpack.c.b16 %v745, %v744
        %v758 = vpack.c.b16 %v747, %v746
        %v759 = vpack.c.b16 %v749, %v748
        %v760 = vpack.c.b16 %v751, %v750
        %v761 = vpack.c.b16 %v753, %v752
        %770 = vmatpush.bf16.msra.mxu0 %v761
        %771 = vmatpush.bf16.msra.mxu0 %v760
        %772 = vmatpush.bf16.msra.mxu0 %v759
        %773 = vmatpush.bf16.msra.mxu0 %v758
        %774 = vmatpush.bf16.msra.mxu0 %v757
        %775 = vmatpush.bf16.msra.mxu0 %v756
        %776 = vmatpush.bf16.msra.mxu0 %v755
        %777 = vmatpush.bf16.msra.mxu0 %v754
        %778 = vmatmul.bf16.gmra.mxu0 %v617
        %v779 = vpop.f32.mrf.mxu0
        %v780 = vadd.f32 0.0, %v779
        %v781 = vpop.f32.mrf.mxu0
        %v782 = vadd.f32 0.0, %v781
        %783 = vmatmul.bf16.gmra.mxu0 %v618
        %v784 = vpop.f32.mrf.mxu0
        %v785 = vadd.f32 0.0, %v784
        %v786 = vpop.f32.mrf.mxu0
        %v787 = vadd.f32 0.0, %v786
        %788 = vmatmul.bf16.gmra.mxu0 %v619
        %v789 = vpop.f32.mrf.mxu0
        %v790 = vadd.f32 0.0, %v789
        %v791 = vpop.f32.mrf.mxu0
        %v792 = vadd.f32 0.0, %v791
        %793 = vmatmul.bf16.gmra.mxu0 %v720
        %v794 = vpop.f32.mrf.mxu0
        %v795 = vadd.f32 0.0, %v794
        %v796 = vpop.f32.mrf.mxu0
        %v797 = vadd.f32 0.0, %v796
        %798 = vdwg.mxu0
        %v799 = vadd.f32 %v682, %v780
        %v800 = vadd.f32 %v684, %v782
        %v801 = vadd.f32 %v687, %v785
        %v802 = vadd.f32 %v689, %v787
        %v803 = vadd.f32 %v692, %v790
        %v804 = vadd.f32 %v694, %v792
        %v805 = vadd.f32 %v697, %v795
        %v806 = vadd.f32 %v699, %v797
        %v807 = vld [vmem:[#allocation2] sm:$0xf]
        %v808 = vld [vmem:[#allocation2 + $0x4] sm:$0x1]
        %v809 = vld [vmem:[#allocation2 + $0x8] sm:$0xf]
        %v810 = vld [vmem:[#allocation2 + $0xc] sm:$0x1]
        %v811 = vld [vmem:[#allocation2 + $0x10] sm:$0xf]
        %v812 = vld [vmem:[#allocation2 + $0x14] sm:$0x1]
        %v813 = vld [vmem:[#allocation2 + $0x18] sm:$0xf]
        %v814 = vld [vmem:[#allocation2 + $0x1c] sm:$0x1]
        %v815 = vld [vmem:[#allocation2 + $0x20] sm:$0xf]
        %v816 = vld [vmem:[#allocation2 + $0x24] sm:$0x1]
        %v817 = vld [vmem:[#allocation2 + $0x28] sm:$0xf]
        %v818 = vld [vmem:[#allocation2 + $0x2c] sm:$0x1]
        %v819 = vld [vmem:[#allocation2 + $0x30] sm:$0xf]
        %v820 = vld [vmem:[#allocation2 + $0x34] sm:$0x1]
        %v821 = vld [vmem:[#allocation2 + $0x38] sm:$0xf]
        %v822 = vld [vmem:[#allocation2 + $0x3c] sm:$0x1]
        %v823 = vld [vmem:[#allocation2 + $0x40] sm:$0xf]
        %v824 = vld [vmem:[#allocation2 + $0x44] sm:$0x1]
        %v825 = vld [vmem:[#allocation2 + $0x48] sm:$0xf]
        %v826 = vld [vmem:[#allocation2 + $0x4c] sm:$0x1]
        %vm827 = vsmask.f32 3328
        %vm828 = vsmask.f32 7440
        %vm829 = vmor %vm827, %vm828
        %v831 = vshrl.u32 %v807, 16
        %v833 = vrot.slane %v831, 4
        %v834 = vshll.u32 %v807, 16
        %v836 = vrot.slane %v834, 5
        %v837 = vor.u32 %v833, %v836
        %v838 = vrot.slane %v837, 4
        %v840 = vshll.u32 %v808, 16
        %v842 = vrot.slane %v840, 5
        %v843 = vsel %vm829, %v838, %v842
        %v845 = vshrl.u32 %v809, 16
        %v847 = vrot.slane %v845, 4
        %v848 = vshll.u32 %v809, 16
        %v850 = vrot.slane %v848, 5
        %v851 = vor.u32 %v847, %v850
        %v852 = vrot.slane %v851, 4
        %v854 = vshll.u32 %v810, 16
        %v856 = vrot.slane %v854, 5
        %v857 = vsel %vm829, %v852, %v856
        %v859 = vshrl.u32 %v811, 16
        %v861 = vrot.slane %v859, 4
        %v862 = vshll.u32 %v811, 16
        %v864 = vrot.slane %v862, 5
        %v865 = vor.u32 %v861, %v864
        %v866 = vrot.slane %v865, 4
        %v868 = vshll.u32 %v812, 16
        %v870 = vrot.slane %v868, 5
        %v871 = vsel %vm829, %v866, %v870
        %v873 = vshrl.u32 %v813, 16
        %v875 = vrot.slane %v873, 4
        %v876 = vshll.u32 %v813, 16
        %v878 = vrot.slane %v876, 5
        %v879 = vor.u32 %v875, %v878
        %v880 = vrot.slane %v879, 4
        %v882 = vshll.u32 %v814, 16
        %v884 = vrot.slane %v882, 5
        %v885 = vsel %vm829, %v880, %v884
        %v887 = vshrl.u32 %v815, 16
        %v889 = vrot.slane %v887, 4
        %v890 = vshll.u32 %v815, 16
        %v892 = vrot.slane %v890, 5
        %v893 = vor.u32 %v889, %v892
        %v894 = vrot.slane %v893, 4
        %v896 = vshll.u32 %v816, 16
        %v898 = vrot.slane %v896, 5
        %v899 = vsel %vm829, %v894, %v898
        %v901 = vshrl.u32 %v817, 16
        %v903 = vrot.slane %v901, 4
        %v904 = vshll.u32 %v817, 16
        %v906 = vrot.slane %v904, 5
        %v907 = vor.u32 %v903, %v906
        %v908 = vrot.slane %v907, 4
        %v910 = vshll.u32 %v818, 16
        %v912 = vrot.slane %v910, 5
        %v913 = vsel %vm829, %v908, %v912
        %v915 = vshrl.u32 %v819, 16
        %v917 = vrot.slane %v915, 4
        %v918 = vshll.u32 %v819, 16
        %v920 = vrot.slane %v918, 5
        %v921 = vor.u32 %v917, %v920
        %v922 = vrot.slane %v921, 4
        %v924 = vshll.u32 %v820, 16
        %v926 = vrot.slane %v924, 5
        %v927 = vsel %vm829, %v922, %v926
        %v929 = vshrl.u32 %v821, 16
        %v931 = vrot.slane %v929, 4
        %v932 = vshll.u32 %v821, 16
        %v934 = vrot.slane %v932, 5
        %v935 = vor.u32 %v931, %v934
        %v936 = vrot.slane %v935, 4
        %v938 = vshll.u32 %v822, 16
        %v940 = vrot.slane %v938, 5
        %v941 = vsel %vm829, %v936, %v940
        %s942 = scalar_lea.vmem %s2, 64
        %v943 = vld [vmem:[%s942] sm:$0xf]
        %v944 = vld [vmem:[%s942 + $0x4] sm:$0xf]
        %v945 = vld [vmem:[%s942 + $0x8] sm:$0xf]
        %v946 = vld [vmem:[%s942 + $0xc] sm:$0xf]
        %v947 = vld [vmem:[%s942 + $0x10] sm:$0xf]
        %v948 = vld [vmem:[%s942 + $0x14] sm:$0xf]
        %v949 = vld [vmem:[%s942 + $0x18] sm:$0xf]
        %v950 = vld [vmem:[%s942 + $0x1c] sm:$0xf]
        %v951 = vld [vmem:[%s942 + $0x20] sm:$0xf]
        %v952 = vld [vmem:[%s942 + $0x24] sm:$0xf]
        %v953 = vld [vmem:[%s942 + $0x28] sm:$0xf]
        %v954 = vld [vmem:[%s942 + $0x2c] sm:$0xf]
        %v955 = vld [vmem:[%s942 + $0x30] sm:$0xf]
        %v956 = vld [vmem:[%s942 + $0x34] sm:$0xf]
        %v957 = vld [vmem:[%s942 + $0x38] sm:$0xf]
        %v958 = vld [vmem:[%s942 + $0x3c] sm:$0xf]
        %v959 = vunpack.c.l.b16 %v843
        %v960 = vunpack.c.l.b16 %v857
        %v961 = vunpack.c.l.b16 %v871
        %v962 = vunpack.c.l.b16 %v885
        %v963 = vunpack.c.l.b16 %v899
        %v964 = vunpack.c.l.b16 %v913
        %v965 = vunpack.c.l.b16 %v927
        %v966 = vunpack.c.l.b16 %v941
        %v967 = vpack.c.b16 %v960, %v959
        %v968 = vpack.c.b16 %v962, %v961
        %v969 = vpack.c.b16 %v964, %v963
        %v970 = vpack.c.b16 %v966, %v965
        %v991 = vunpack.c.l.b16 %v943
        %v992 = vunpack.c.l.b16 %v944
        %v993 = vunpack.c.l.b16 %v945
        %v994 = vunpack.c.l.b16 %v946
        %v995 = vunpack.c.l.b16 %v947
        %v996 = vunpack.c.l.b16 %v948
        %v997 = vunpack.c.l.b16 %v949
        %v998 = vunpack.c.l.b16 %v950
        %v999 = vunpack.c.l.b16 %v951
        %v1000 = vunpack.c.l.b16 %v952
        %v1001 = vunpack.c.l.b16 %v953
        %v1002 = vunpack.c.l.b16 %v954
        %v1003 = vunpack.c.l.b16 %v955
        %v1004 = vunpack.c.l.b16 %v956
        %v1005 = vunpack.c.l.b16 %v957
        %v1006 = vunpack.c.l.b16 %v958
        %v1007 = vpack.c.b16 %v992, %v991
        %v1008 = vpack.c.b16 %v994, %v993
        %v1009 = vpack.c.b16 %v996, %v995
        %v1010 = vpack.c.b16 %v998, %v997
        %v1011 = vpack.c.b16 %v1000, %v999
        %v1012 = vpack.c.b16 %v1002, %v1001
        %v1013 = vpack.c.b16 %v1004, %v1003
        %v1014 = vpack.c.b16 %v1006, %v1005
        %1023 = vmatpush.bf16.msra.mxu0 %v1014
        %1024 = vmatpush.bf16.msra.mxu0 %v1013
        %1025 = vmatpush.bf16.msra.mxu0 %v1012
        %1026 = vmatpush.bf16.msra.mxu0 %v1011
        %1027 = vmatpush.bf16.msra.mxu0 %v1010
        %1028 = vmatpush.bf16.msra.mxu0 %v1009
        %1029 = vmatpush.bf16.msra.mxu0 %v1008
        %1030 = vmatpush.bf16.msra.mxu0 %v1007
        %1031 = vmatmul.bf16.gmra.mxu0 %v967
        %v1032 = vpop.f32.mrf.mxu0
        %v1033 = vadd.f32 0.0, %v1032
        %v1034 = vpop.f32.mrf.mxu0
        %v1035 = vadd.f32 0.0, %v1034
        %1036 = vmatmul.bf16.gmra.mxu0 %v968
        %v1037 = vpop.f32.mrf.mxu0
        %v1038 = vadd.f32 0.0, %v1037
        %v1039 = vpop.f32.mrf.mxu0
        %v1040 = vadd.f32 0.0, %v1039
        %1041 = vmatmul.bf16.gmra.mxu0 %v969
        %v1042 = vpop.f32.mrf.mxu0
        %v1043 = vadd.f32 0.0, %v1042
        %v1044 = vpop.f32.mrf.mxu0
        %v1045 = vadd.f32 0.0, %v1044
        %1046 = vmatmul.bf16.gmra.mxu0 %v970
        %v1047 = vpop.f32.mrf.mxu0
        %v1048 = vadd.f32 0.0, %v1047
        %v1049 = vpop.f32.mrf.mxu0
        %v1050 = vadd.f32 0.0, %v1049
        %1051 = vdwg.mxu0
        %v1052 = vadd.f32 %v799, %v1033
        %v1053 = vadd.f32 %v800, %v1035
        %v1054 = vadd.f32 %v801, %v1038
        %v1055 = vadd.f32 %v802, %v1040
        %v1056 = vadd.f32 %v803, %v1043
        %v1057 = vadd.f32 %v804, %v1045
        %v1058 = vadd.f32 %v805, %v1048
        %v1059 = vadd.f32 %v806, %v1050
        %v1061 = vshrl.u32 %v823, 16
        %v1063 = vrot.slane %v1061, 4
        %v1064 = vshll.u32 %v823, 16
        %v1066 = vrot.slane %v1064, 5
        %v1067 = vor.u32 %v1063, %v1066
        %v1068 = vrot.slane %v1067, 4
        %v1070 = vshll.u32 %v824, 16
        %v1072 = vrot.slane %v1070, 5
        %v1073 = vsel %vm829, %v1068, %v1072
        %s1074 = scalar_lea.vmem %s2, 256
        %v1075 = vld [vmem:[%s1074] sm:$0xf]
        %v1076 = vld [vmem:[%s1074 + $0x4] sm:$0xf]
        %v1077 = vld [vmem:[%s1074 + $0x8] sm:$0xf]
        %v1078 = vld [vmem:[%s1074 + $0xc] sm:$0xf]
        %v1079 = vld [vmem:[%s1074 + $0x10] sm:$0xf]
        %v1080 = vld [vmem:[%s1074 + $0x14] sm:$0xf]
        %v1081 = vld [vmem:[%s1074 + $0x18] sm:$0xf]
        %v1082 = vld [vmem:[%s1074 + $0x1c] sm:$0xf]
        %v1083 = vld [vmem:[%s1074 + $0x20] sm:$0xf]
        %v1084 = vld [vmem:[%s1074 + $0x24] sm:$0xf]
        %v1085 = vld [vmem:[%s1074 + $0x28] sm:$0xf]
        %v1086 = vld [vmem:[%s1074 + $0x2c] sm:$0xf]
        %v1087 = vld [vmem:[%s1074 + $0x30] sm:$0xf]
        %v1088 = vld [vmem:[%s1074 + $0x34] sm:$0xf]
        %v1089 = vld [vmem:[%s1074 + $0x38] sm:$0xf]
        %v1090 = vld [vmem:[%s1074 + $0x3c] sm:$0xf]
        %v1091 = vunpack.c.l.b16 %v1073
        %v1092 = vpack.c.b16 %v961, %v960
        %v1093 = vpack.c.b16 %v963, %v962
        %v1094 = vpack.c.b16 %v965, %v964
        %v1095 = vpack.c.b16 %v1091, %v966
        %v1116 = vunpack.c.l.b16 %v1075
        %v1117 = vunpack.c.l.b16 %v1076
        %v1118 = vunpack.c.l.b16 %v1077
        %v1119 = vunpack.c.l.b16 %v1078
        %v1120 = vunpack.c.l.b16 %v1079
        %v1121 = vunpack.c.l.b16 %v1080
        %v1122 = vunpack.c.l.b16 %v1081
        %v1123 = vunpack.c.l.b16 %v1082
        %v1124 = vunpack.c.l.b16 %v1083
        %v1125 = vunpack.c.l.b16 %v1084
        %v1126 = vunpack.c.l.b16 %v1085
        %v1127 = vunpack.c.l.b16 %v1086
        %v1128 = vunpack.c.l.b16 %v1087
        %v1129 = vunpack.c.l.b16 %v1088
        %v1130 = vunpack.c.l.b16 %v1089
        %v1131 = vunpack.c.l.b16 %v1090
        %v1132 = vpack.c.b16 %v1117, %v1116
        %v1133 = vpack.c.b16 %v1119, %v1118
        %v1134 = vpack.c.b16 %v1121, %v1120
        %v1135 = vpack.c.b16 %v1123, %v1122
        %v1136 = vpack.c.b16 %v1125, %v1124
        %v1137 = vpack.c.b16 %v1127, %v1126
        %v1138 = vpack.c.b16 %v1129, %v1128
        %v1139 = vpack.c.b16 %v1131, %v1130
        %1148 = vmatpush.bf16.msra.mxu0 %v1139
        %1149 = vmatpush.bf16.msra.mxu0 %v1138
        %1150 = vmatpush.bf16.msra.mxu0 %v1137
        %1151 = vmatpush.bf16.msra.mxu0 %v1136
        %1152 = vmatpush.bf16.msra.mxu0 %v1135
        %1153 = vmatpush.bf16.msra.mxu0 %v1134
        %1154 = vmatpush.bf16.msra.mxu0 %v1133
        %1155 = vmatpush.bf16.msra.mxu0 %v1132
        %1156 = vmatmul.bf16.gmra.mxu0 %v1092
        %v1157 = vpop.f32.mrf.mxu0
        %v1158 = vadd.f32 0.0, %v1157
        %v1159 = vpop.f32.mrf.mxu0
        %v1160 = vadd.f32 0.0, %v1159
        %1161 = vmatmul.bf16.gmra.mxu0 %v1093
        %v1162 = vpop.f32.mrf.mxu0
        %v1163 = vadd.f32 0.0, %v1162
        %v1164 = vpop.f32.mrf.mxu0
        %v1165 = vadd.f32 0.0, %v1164
        %1166 = vmatmul.bf16.gmra.mxu0 %v1094
        %v1167 = vpop.f32.mrf.mxu0
        %v1168 = vadd.f32 0.0, %v1167
        %v1169 = vpop.f32.mrf.mxu0
        %v1170 = vadd.f32 0.0, %v1169
        %1171 = vmatmul.bf16.gmra.mxu0 %v1095
        %v1172 = vpop.f32.mrf.mxu0
        %v1173 = vadd.f32 0.0, %v1172
        %v1174 = vpop.f32.mrf.mxu0
        %v1175 = vadd.f32 0.0, %v1174
        %1176 = vdwg.mxu0
        %v1177 = vadd.f32 %v1052, %v1158
        %v1178 = vadd.f32 %v1053, %v1160
        %v1179 = vadd.f32 %v1054, %v1163
        %v1180 = vadd.f32 %v1055, %v1165
        %v1181 = vadd.f32 %v1056, %v1168
        %v1182 = vadd.f32 %v1057, %v1170
        %v1183 = vadd.f32 %v1058, %v1173
        %v1184 = vadd.f32 %v1059, %v1175
        %v1186 = vshrl.u32 %v825, 16
        %v1188 = vrot.slane %v1186, 4
        %v1189 = vshll.u32 %v825, 16
        %v1191 = vrot.slane %v1189, 5
        %v1192 = vor.u32 %v1188, %v1191
        %v1193 = vrot.slane %v1192, 4
        %v1195 = vshll.u32 %v826, 16
        %v1197 = vrot.slane %v1195, 5
        %v1198 = vsel %vm829, %v1193, %v1197
        %s1199 = scalar_lea.vmem %s2, 448
        %v1200 = vld [vmem:[%s1199] sm:$0xf]
        %v1201 = vld [vmem:[%s1199 + $0x4] sm:$0xf]
        %v1202 = vld [vmem:[%s1199 + $0x8] sm:$0xf]
        %v1203 = vld [vmem:[%s1199 + $0xc] sm:$0xf]
        %v1204 = vld [vmem:[%s1199 + $0x10] sm:$0xf]
        %v1205 = vld [vmem:[%s1199 + $0x14] sm:$0xf]
        %v1206 = vld [vmem:[%s1199 + $0x18] sm:$0xf]
        %v1207 = vld [vmem:[%s1199 + $0x1c] sm:$0xf]
        %v1208 = vld [vmem:[%s1199 + $0x20] sm:$0xf]
        %v1209 = vld [vmem:[%s1199 + $0x24] sm:$0xf]
        %v1210 = vld [vmem:[%s1199 + $0x28] sm:$0xf]
        %v1211 = vld [vmem:[%s1199 + $0x2c] sm:$0xf]
        %v1212 = vld [vmem:[%s1199 + $0x30] sm:$0xf]
        %v1213 = vld [vmem:[%s1199 + $0x34] sm:$0xf]
        %v1214 = vld [vmem:[%s1199 + $0x38] sm:$0xf]
        %v1215 = vld [vmem:[%s1199 + $0x3c] sm:$0xf]
        %v1216 = vunpack.c.l.b16 %v1198
        %v1217 = vpack.c.b16 %v1216, %v1091
        %v1235 = vunpack.c.l.b16 %v1200
        %v1236 = vunpack.c.l.b16 %v1201
        %v1237 = vunpack.c.l.b16 %v1202
        %v1238 = vunpack.c.l.b16 %v1203
        %v1239 = vunpack.c.l.b16 %v1204
        %v1240 = vunpack.c.l.b16 %v1205
        %v1241 = vunpack.c.l.b16 %v1206
        %v1242 = vunpack.c.l.b16 %v1207
        %v1243 = vunpack.c.l.b16 %v1208
        %v1244 = vunpack.c.l.b16 %v1209
        %v1245 = vunpack.c.l.b16 %v1210
        %v1246 = vunpack.c.l.b16 %v1211
        %v1247 = vunpack.c.l.b16 %v1212
        %v1248 = vunpack.c.l.b16 %v1213
        %v1249 = vunpack.c.l.b16 %v1214
        %v1250 = vunpack.c.l.b16 %v1215
        %v1251 = vpack.c.b16 %v1236, %v1235
        %v1252 = vpack.c.b16 %v1238, %v1237
        %v1253 = vpack.c.b16 %v1240, %v1239
        %v1254 = vpack.c.b16 %v1242, %v1241
        %v1255 = vpack.c.b16 %v1244, %v1243
        %v1256 = vpack.c.b16 %v1246, %v1245
        %v1257 = vpack.c.b16 %v1248, %v1247
        %v1258 = vpack.c.b16 %v1250, %v1249
        %1267 = vmatpush.bf16.msra.mxu0 %v1258
        %1268 = vmatpush.bf16.msra.mxu0 %v1257
        %1269 = vmatpush.bf16.msra.mxu0 %v1256
        %1270 = vmatpush.bf16.msra.mxu0 %v1255
        %1271 = vmatpush.bf16.msra.mxu0 %v1254
        %1272 = vmatpush.bf16.msra.mxu0 %v1253
        %1273 = vmatpush.bf16.msra.mxu0 %v1252
        %1274 = vmatpush.bf16.msra.mxu0 %v1251
        %1275 = vmatmul.bf16.gmra.mxu0 %v968
        %v1276 = vpop.f32.mrf.mxu0
        %v1277 = vadd.f32 0.0, %v1276
        %v1278 = vpop.f32.mrf.mxu0
        %v1279 = vadd.f32 0.0, %v1278
        %1280 = vmatmul.bf16.gmra.mxu0 %v969
        %v1281 = vpop.f32.mrf.mxu0
        %v1282 = vadd.f32 0.0, %v1281
        %v1283 = vpop.f32.mrf.mxu0
        %v1284 = vadd.f32 0.0, %v1283
        %1285 = vmatmul.bf16.gmra.mxu0 %v970
        %v1286 = vpop.f32.mrf.mxu0
        %v1287 = vadd.f32 0.0, %v1286
        %v1288 = vpop.f32.mrf.mxu0
        %v1289 = vadd.f32 0.0, %v1288
        %1290 = vmatmul.bf16.gmra.mxu0 %v1217
        %v1291 = vpop.f32.mrf.mxu0
        %v1292 = vadd.f32 0.0, %v1291
        %v1293 = vpop.f32.mrf.mxu0
        %v1294 = vadd.f32 0.0, %v1293
        %1295 = vdwg.mxu0
        %v1296 = vadd.f32 %v1177, %v1277
        %v1297 = vadd.f32 %v1178, %v1279
        %v1298 = vadd.f32 %v1179, %v1282
        %v1299 = vadd.f32 %v1180, %v1284
        %v1300 = vadd.f32 %v1181, %v1287
        %v1301 = vadd.f32 %v1182, %v1289
        %v1302 = vadd.f32 %v1183, %v1292
        %v1303 = vadd.f32 %v1184, %v1294
        %v1304 = vld [vmem:[#allocation2] sm:$0xe]
        %v1305 = vld [vmem:[#allocation2 + $0x8] sm:$0xe]
        %v1306 = vld [vmem:[#allocation2 + $0x10] sm:$0xe]
        %v1307 = vld [vmem:[#allocation2 + $0x18] sm:$0xe]
        %v1308 = vld [vmem:[#allocation2 + $0x20] sm:$0xe]
        %v1309 = vld [vmem:[#allocation2 + $0x28] sm:$0xe]
        %v1310 = vld [vmem:[#allocation2 + $0x30] sm:$0xe]
        %v1311 = vld [vmem:[#allocation2 + $0x38] sm:$0xe]
        %v1312 = vld [vmem:[#allocation2 + $0x40] sm:$0xe]
        %v1313 = vld [vmem:[#allocation2 + $0x48] sm:$0xe]
        %vm1330 = vcmask 1042432
        %vm1331 = vcmask 1046532
        %vm1332 = vmor %vm1330, %vm1331
        %v1333 = vrot.slane %v1304, 5
        %v1334 = vrot.slane %v1333, 4
        %v1335 = vrot.slane %v808, 5
        %v1336 = vsel %vm1332, %v1334, %v1335
        %v1337 = vrot.slane %v1305, 5
        %v1338 = vrot.slane %v1337, 4
        %v1339 = vrot.slane %v810, 5
        %v1340 = vsel %vm1332, %v1338, %v1339
        %v1341 = vrot.slane %v1306, 5
        %v1342 = vrot.slane %v1341, 4
        %v1343 = vrot.slane %v812, 5
        %v1344 = vsel %vm1332, %v1342, %v1343
        %v1345 = vrot.slane %v1307, 5
        %v1346 = vrot.slane %v1345, 4
        %v1347 = vrot.slane %v814, 5
        %v1348 = vsel %vm1332, %v1346, %v1347
        %v1349 = vrot.slane %v1308, 5
        %v1350 = vrot.slane %v1349, 4
        %v1351 = vrot.slane %v816, 5
        %v1352 = vsel %vm1332, %v1350, %v1351
        %v1353 = vrot.slane %v1309, 5
        %v1354 = vrot.slane %v1353, 4
        %v1355 = vrot.slane %v818, 5
        %v1356 = vsel %vm1332, %v1354, %v1355
        %v1357 = vrot.slane %v1310, 5
        %v1358 = vrot.slane %v1357, 4
        %v1359 = vrot.slane %v820, 5
        %v1360 = vsel %vm1332, %v1358, %v1359
        %v1361 = vrot.slane %v1311, 5
        %v1362 = vrot.slane %v1361, 4
        %v1363 = vrot.slane %v822, 5
        %v1364 = vsel %vm1332, %v1362, %v1363
        %s1365 = scalar_lea.vmem %s2, 128
        %v1366 = vld [vmem:[%s1365] sm:$0xf]
        %v1367 = vld [vmem:[%s1365 + $0x4] sm:$0xf]
        %v1368 = vld [vmem:[%s1365 + $0x8] sm:$0xf]
        %v1369 = vld [vmem:[%s1365 + $0xc] sm:$0xf]
        %v1370 = vld [vmem:[%s1365 + $0x10] sm:$0xf]
        %v1371 = vld [vmem:[%s1365 + $0x14] sm:$0xf]
        %v1372 = vld [vmem:[%s1365 + $0x18] sm:$0xf]
        %v1373 = vld [vmem:[%s1365 + $0x1c] sm:$0xf]
        %v1374 = vld [vmem:[%s1365 + $0x20] sm:$0xf]
        %v1375 = vld [vmem:[%s1365 + $0x24] sm:$0xf]
        %v1376 = vld [vmem:[%s1365 + $0x28] sm:$0xf]
        %v1377 = vld [vmem:[%s1365 + $0x2c] sm:$0xf]
        %v1378 = vld [vmem:[%s1365 + $0x30] sm:$0xf]
        %v1379 = vld [vmem:[%s1365 + $0x34] sm:$0xf]
        %v1380 = vld [vmem:[%s1365 + $0x38] sm:$0xf]
        %v1381 = vld [vmem:[%s1365 + $0x3c] sm:$0xf]
        %v1382 = vunpack.c.l.b16 %v1336
        %v1383 = vunpack.c.l.b16 %v1340
        %v1384 = vunpack.c.l.b16 %v1344
        %v1385 = vunpack.c.l.b16 %v1348
        %v1386 = vunpack.c.l.b16 %v1352
        %v1387 = vunpack.c.l.b16 %v1356
        %v1388 = vunpack.c.l.b16 %v1360
        %v1389 = vunpack.c.l.b16 %v1364
        %v1390 = vpack.c.b16 %v1383, %v1382
        %v1391 = vpack.c.b16 %v1385, %v1384
        %v1392 = vpack.c.b16 %v1387, %v1386
        %v1393 = vpack.c.b16 %v1389, %v1388
        %v1414 = vunpack.c.l.b16 %v1366
        %v1415 = vunpack.c.l.b16 %v1367
        %v1416 = vunpack.c.l.b16 %v1368
        %v1417 = vunpack.c.l.b16 %v1369
        %v1418 = vunpack.c.l.b16 %v1370
        %v1419 = vunpack.c.l.b16 %v1371
        %v1420 = vunpack.c.l.b16 %v1372
        %v1421 = vunpack.c.l.b16 %v1373
        %v1422 = vunpack.c.l.b16 %v1374
        %v1423 = vunpack.c.l.b16 %v1375
        %v1424 = vunpack.c.l.b16 %v1376
        %v1425 = vunpack.c.l.b16 %v1377
        %v1426 = vunpack.c.l.b16 %v1378
        %v1427 = vunpack.c.l.b16 %v1379
        %v1428 = vunpack.c.l.b16 %v1380
        %v1429 = vunpack.c.l.b16 %v1381
        %v1430 = vpack.c.b16 %v1415, %v1414
        %v1431 = vpack.c.b16 %v1417, %v1416
        %v1432 = vpack.c.b16 %v1419, %v1418
        %v1433 = vpack.c.b16 %v1421, %v1420
        %v1434 = vpack.c.b16 %v1423, %v1422
        %v1435 = vpack.c.b16 %v1425, %v1424
        %v1436 = vpack.c.b16 %v1427, %v1426
        %v1437 = vpack.c.b16 %v1429, %v1428
        %1446 = vmatpush.bf16.msra.mxu0 %v1437
        %1447 = vmatpush.bf16.msra.mxu0 %v1436
        %1448 = vmatpush.bf16.msra.mxu0 %v1435
        %1449 = vmatpush.bf16.msra.mxu0 %v1434
        %1450 = vmatpush.bf16.msra.mxu0 %v1433
        %1451 = vmatpush.bf16.msra.mxu0 %v1432
        %1452 = vmatpush.bf16.msra.mxu0 %v1431
        %1453 = vmatpush.bf16.msra.mxu0 %v1430
        %1454 = vmatmul.bf16.gmra.mxu0 %v1390
        %v1455 = vpop.f32.mrf.mxu0
        %v1456 = vadd.f32 0.0, %v1455
        %v1457 = vpop.f32.mrf.mxu0
        %v1458 = vadd.f32 0.0, %v1457
        %1459 = vmatmul.bf16.gmra.mxu0 %v1391
        %v1460 = vpop.f32.mrf.mxu0
        %v1461 = vadd.f32 0.0, %v1460
        %v1462 = vpop.f32.mrf.mxu0
        %v1463 = vadd.f32 0.0, %v1462
        %1464 = vmatmul.bf16.gmra.mxu0 %v1392
        %v1465 = vpop.f32.mrf.mxu0
        %v1466 = vadd.f32 0.0, %v1465
        %v1467 = vpop.f32.mrf.mxu0
        %v1468 = vadd.f32 0.0, %v1467
        %1469 = vmatmul.bf16.gmra.mxu0 %v1393
        %v1470 = vpop.f32.mrf.mxu0
        %v1471 = vadd.f32 0.0, %v1470
        %v1472 = vpop.f32.mrf.mxu0
        %v1473 = vadd.f32 0.0, %v1472
        %1474 = vdwg.mxu0
        %v1475 = vadd.f32 %v1296, %v1456
        %v1476 = vadd.f32 %v1297, %v1458
        %v1477 = vadd.f32 %v1298, %v1461
        %v1478 = vadd.f32 %v1299, %v1463
        %v1479 = vadd.f32 %v1300, %v1466
        %v1480 = vadd.f32 %v1301, %v1468
        %v1481 = vadd.f32 %v1302, %v1471
        %v1482 = vadd.f32 %v1303, %v1473
        %v1485 = vrot.slane %v1312, 5
        %v1486 = vrot.slane %v1485, 4
        %v1487 = vrot.slane %v824, 5
        %v1488 = vsel %vm1332, %v1486, %v1487
        %s1489 = scalar_lea.vmem %s2, 320
        %v1490 = vld [vmem:[%s1489] sm:$0xf]
        %v1491 = vld [vmem:[%s1489 + $0x4] sm:$0xf]
        %v1492 = vld [vmem:[%s1489 + $0x8] sm:$0xf]
        %v1493 = vld [vmem:[%s1489 + $0xc] sm:$0xf]
        %v1494 = vld [vmem:[%s1489 + $0x10] sm:$0xf]
        %v1495 = vld [vmem:[%s1489 + $0x14] sm:$0xf]
        %v1496 = vld [vmem:[%s1489 + $0x18] sm:$0xf]
        %v1497 = vld [vmem:[%s1489 + $0x1c] sm:$0xf]
        %v1498 = vld [vmem:[%s1489 + $0x20] sm:$0xf]
        %v1499 = vld [vmem:[%s1489 + $0x24] sm:$0xf]
        %v1500 = vld [vmem:[%s1489 + $0x28] sm:$0xf]
        %v1501 = vld [vmem:[%s1489 + $0x2c] sm:$0xf]
        %v1502 = vld [vmem:[%s1489 + $0x30] sm:$0xf]
        %v1503 = vld [vmem:[%s1489 + $0x34] sm:$0xf]
        %v1504 = vld [vmem:[%s1489 + $0x38] sm:$0xf]
        %v1505 = vld [vmem:[%s1489 + $0x3c] sm:$0xf]
        %v1506 = vunpack.c.l.b16 %v1488
        %v1507 = vpack.c.b16 %v1384, %v1383
        %v1508 = vpack.c.b16 %v1386, %v1385
        %v1509 = vpack.c.b16 %v1388, %v1387
        %v1510 = vpack.c.b16 %v1506, %v1389
        %v1531 = vunpack.c.l.b16 %v1490
        %v1532 = vunpack.c.l.b16 %v1491
        %v1533 = vunpack.c.l.b16 %v1492
        %v1534 = vunpack.c.l.b16 %v1493
        %v1535 = vunpack.c.l.b16 %v1494
        %v1536 = vunpack.c.l.b16 %v1495
        %v1537 = vunpack.c.l.b16 %v1496
        %v1538 = vunpack.c.l.b16 %v1497
        %v1539 = vunpack.c.l.b16 %v1498
        %v1540 = vunpack.c.l.b16 %v1499
        %v1541 = vunpack.c.l.b16 %v1500
        %v1542 = vunpack.c.l.b16 %v1501
        %v1543 = vunpack.c.l.b16 %v1502
        %v1544 = vunpack.c.l.b16 %v1503
        %v1545 = vunpack.c.l.b16 %v1504
        %v1546 = vunpack.c.l.b16 %v1505
        %v1547 = vpack.c.b16 %v1532, %v1531
        %v1548 = vpack.c.b16 %v1534, %v1533
        %v1549 = vpack.c.b16 %v1536, %v1535
        %v1550 = vpack.c.b16 %v1538, %v1537
        %v1551 = vpack.c.b16 %v1540, %v1539
        %v1552 = vpack.c.b16 %v1542, %v1541
        %v1553 = vpack.c.b16 %v1544, %v1543
        %v1554 = vpack.c.b16 %v1546, %v1545
        %1563 = vmatpush.bf16.msra.mxu0 %v1554
        %1564 = vmatpush.bf16.msra.mxu0 %v1553
        %1565 = vmatpush.bf16.msra.mxu0 %v1552
        %1566 = vmatpush.bf16.msra.mxu0 %v1551
        %1567 = vmatpush.bf16.msra.mxu0 %v1550
        %1568 = vmatpush.bf16.msra.mxu0 %v1549
        %1569 = vmatpush.bf16.msra.mxu0 %v1548
        %1570 = vmatpush.bf16.msra.mxu0 %v1547
        %1571 = vmatmul.bf16.gmra.mxu0 %v1507
        %v1572 = vpop.f32.mrf.mxu0
        %v1573 = vadd.f32 0.0, %v1572
        %v1574 = vpop.f32.mrf.mxu0
        %v1575 = vadd.f32 0.0, %v1574
        %1576 = vmatmul.bf16.gmra.mxu0 %v1508
        %v1577 = vpop.f32.mrf.mxu0
        %v1578 = vadd.f32 0.0, %v1577
        %v1579 = vpop.f32.mrf.mxu0
        %v1580 = vadd.f32 0.0, %v1579
        %1581 = vmatmul.bf16.gmra.mxu0 %v1509
        %v1582 = vpop.f32.mrf.mxu0
        %v1583 = vadd.f32 0.0, %v1582
        %v1584 = vpop.f32.mrf.mxu0
        %v1585 = vadd.f32 0.0, %v1584
        %1586 = vmatmul.bf16.gmra.mxu0 %v1510
        %v1587 = vpop.f32.mrf.mxu0
        %v1588 = vadd.f32 0.0, %v1587
        %v1589 = vpop.f32.mrf.mxu0
        %v1590 = vadd.f32 0.0, %v1589
        %1591 = vdwg.mxu0
        %v1592 = vadd.f32 %v1475, %v1573
        %v1593 = vadd.f32 %v1476, %v1575
        %v1594 = vadd.f32 %v1477, %v1578
        %v1595 = vadd.f32 %v1478, %v1580
        %v1596 = vadd.f32 %v1479, %v1583
        %v1597 = vadd.f32 %v1480, %v1585
        %v1598 = vadd.f32 %v1481, %v1588
        %v1599 = vadd.f32 %v1482, %v1590
        %v1602 = vrot.slane %v1313, 5
        %v1603 = vrot.slane %v1602, 4
        %v1604 = vrot.slane %v826, 5
        %v1605 = vsel %vm1332, %v1603, %v1604
        %s1606 = scalar_lea.vmem %s2, 512
        %v1607 = vld [vmem:[%s1606] sm:$0xf]
        %v1608 = vld [vmem:[%s1606 + $0x4] sm:$0xf]
        %v1609 = vld [vmem:[%s1606 + $0x8] sm:$0xf]
        %v1610 = vld [vmem:[%s1606 + $0xc] sm:$0xf]
        %v1611 = vld [vmem:[%s1606 + $0x10] sm:$0xf]
        %v1612 = vld [vmem:[%s1606 + $0x14] sm:$0xf]
        %v1613 = vld [vmem:[%s1606 + $0x18] sm:$0xf]
        %v1614 = vld [vmem:[%s1606 + $0x1c] sm:$0xf]
        %v1615 = vld [vmem:[%s1606 + $0x20] sm:$0xf]
        %v1616 = vld [vmem:[%s1606 + $0x24] sm:$0xf]
        %v1617 = vld [vmem:[%s1606 + $0x28] sm:$0xf]
        %v1618 = vld [vmem:[%s1606 + $0x2c] sm:$0xf]
        %v1619 = vld [vmem:[%s1606 + $0x30] sm:$0xf]
        %v1620 = vld [vmem:[%s1606 + $0x34] sm:$0xf]
        %v1621 = vld [vmem:[%s1606 + $0x38] sm:$0xf]
        %v1622 = vld [vmem:[%s1606 + $0x3c] sm:$0xf]
        %v1623 = vunpack.c.l.b16 %v1605
        %v1624 = vpack.c.b16 %v1623, %v1506
        %v1642 = vunpack.c.l.b16 %v1607
        %v1643 = vunpack.c.l.b16 %v1608
        %v1644 = vunpack.c.l.b16 %v1609
        %v1645 = vunpack.c.l.b16 %v1610
        %v1646 = vunpack.c.l.b16 %v1611
        %v1647 = vunpack.c.l.b16 %v1612
        %v1648 = vunpack.c.l.b16 %v1613
        %v1649 = vunpack.c.l.b16 %v1614
        %v1650 = vunpack.c.l.b16 %v1615
        %v1651 = vunpack.c.l.b16 %v1616
        %v1652 = vunpack.c.l.b16 %v1617
        %v1653 = vunpack.c.l.b16 %v1618
        %v1654 = vunpack.c.l.b16 %v1619
        %v1655 = vunpack.c.l.b16 %v1620
        %v1656 = vunpack.c.l.b16 %v1621
        %v1657 = vunpack.c.l.b16 %v1622
        %v1658 = vpack.c.b16 %v1643, %v1642
        %v1659 = vpack.c.b16 %v1645, %v1644
        %v1660 = vpack.c.b16 %v1647, %v1646
        %v1661 = vpack.c.b16 %v1649, %v1648
        %v1662 = vpack.c.b16 %v1651, %v1650
        %v1663 = vpack.c.b16 %v1653, %v1652
        %v1664 = vpack.c.b16 %v1655, %v1654
        %v1665 = vpack.c.b16 %v1657, %v1656
        %1674 = vmatpush.bf16.msra.mxu0 %v1665
        %1675 = vmatpush.bf16.msra.mxu0 %v1664
        %1676 = vmatpush.bf16.msra.mxu0 %v1663
        %1677 = vmatpush.bf16.msra.mxu0 %v1662
        %1678 = vmatpush.bf16.msra.mxu0 %v1661
        %1679 = vmatpush.bf16.msra.mxu0 %v1660
        %1680 = vmatpush.bf16.msra.mxu0 %v1659
        %1681 = vmatpush.bf16.msra.mxu0 %v1658
        %1682 = vmatmul.bf16.gmra.mxu0 %v1391
        %v1683 = vpop.f32.mrf.mxu0
        %v1684 = vadd.f32 0.0, %v1683
        %v1685 = vpop.f32.mrf.mxu0
        %v1686 = vadd.f32 0.0, %v1685
        %1687 = vmatmul.bf16.gmra.mxu0 %v1392
        %v1688 = vpop.f32.mrf.mxu0
        %v1689 = vadd.f32 0.0, %v1688
        %v1690 = vpop.f32.mrf.mxu0
        %v1691 = vadd.f32 0.0, %v1690
        %1692 = vmatmul.bf16.gmra.mxu0 %v1393
        %v1693 = vpop.f32.mrf.mxu0
        %v1694 = vadd.f32 0.0, %v1693
        %v1695 = vpop.f32.mrf.mxu0
        %v1696 = vadd.f32 0.0, %v1695
        %1697 = vmatmul.bf16.gmra.mxu0 %v1624
        %v1698 = vpop.f32.mrf.mxu0
        %v1699 = vadd.f32 0.0, %v1698
        %v1700 = vpop.f32.mrf.mxu0
        %v1701 = vadd.f32 0.0, %v1700
        %1702 = vdwg.mxu0
        %v1703 = vadd.f32 %v1592, %v1684
        %v1704 = vadd.f32 %v1593, %v1686
        %v1705 = vadd.f32 %v1594, %v1689
        %v1706 = vadd.f32 %v1595, %v1691
        %v1707 = vadd.f32 %v1596, %v1694
        %v1708 = vadd.f32 %v1597, %v1696
        %v1709 = vadd.f32 %v1598, %v1699
        %v1710 = vadd.f32 %v1599, %v1701
        %v1711 = vld [vmem:[%s3] sm:$0x1]
        %v1713 = vperm.slane %v1711, 0
        %v1715 = vadd.f32 %v1703, %v1713
        %v1716 = vadd.f32 %v1704, %v1713
        %v1717 = vadd.f32 %v1705, %v1713
        %v1718 = vadd.f32 %v1706, %v1713
        %v1719 = vadd.f32 %v1707, %v1713
        %v1720 = vadd.f32 %v1708, %v1713
        %v1721 = vadd.f32 %v1709, %v1713
        %v1722 = vadd.f32 %v1710, %v1713
        %v1723 = vmax.f32 %v1715, 0.0
        %v1724 = vmax.f32 %v1716, 0.0
        %v1725 = vmax.f32 %v1717, 0.0
        %v1726 = vmax.f32 %v1718, 0.0
        %v1727 = vmax.f32 %v1719, 0.0
        %v1728 = vmax.f32 %v1720, 0.0
        %v1729 = vmax.f32 %v1721, 0.0
        %v1730 = vmax.f32 %v1722, 0.0
        %v1731 = vpack.c.bf16 %v1724, %v1723
        %v1732 = vpack.c.bf16 %v1726, %v1725
        %v1733 = vpack.c.bf16 %v1728, %v1727
        %v1734 = vpack.c.bf16 %v1730, %v1729
        %v1735 = vld [vmem:[%s4] sm:$0xf]
        %v1736 = vld [vmem:[%s4 + $0x4] sm:$0xf]
        %v1737 = vld [vmem:[%s4 + $0x8] sm:$0xf]
        %v1738 = vld [vmem:[%s4 + $0xc] sm:$0xf]
        %v1739 = vld [vmem:[%s4 + $0x10] sm:$0xf]
        %v1740 = vld [vmem:[%s4 + $0x14] sm:$0xf]
        %v1741 = vld [vmem:[%s4 + $0x18] sm:$0xf]
        %v1742 = vld [vmem:[%s4 + $0x1c] sm:$0xf]
        %v1743 = vld [vmem:[%s4 + $0x20] sm:$0xf]
        %v1744 = vld [vmem:[%s4 + $0x24] sm:$0xf]
        %v1745 = vld [vmem:[%s4 + $0x28] sm:$0xf]
        %v1746 = vld [vmem:[%s4 + $0x2c] sm:$0xf]
        %v1747 = vld [vmem:[%s4 + $0x30] sm:$0xf]
        %v1748 = vld [vmem:[%s4 + $0x34] sm:$0xf]
        %v1749 = vld [vmem:[%s4 + $0x38] sm:$0xf]
        %v1750 = vld [vmem:[%s4 + $0x3c] sm:$0xf]
        %v1751 = vld [vmem:[%s5] sm:$0x1]
        %v1753 = vperm.slane %v1751, 0
        %v1771 = vunpack.c.l.b16 %v1735
        %v1772 = vunpack.c.l.b16 %v1736
        %v1773 = vunpack.c.l.b16 %v1737
        %v1774 = vunpack.c.l.b16 %v1738
        %v1775 = vunpack.c.l.b16 %v1739
        %v1776 = vunpack.c.l.b16 %v1740
        %v1777 = vunpack.c.l.b16 %v1741
        %v1778 = vunpack.c.l.b16 %v1742
        %v1779 = vunpack.c.l.b16 %v1743
        %v1780 = vunpack.c.l.b16 %v1744
        %v1781 = vunpack.c.l.b16 %v1745
        %v1782 = vunpack.c.l.b16 %v1746
        %v1783 = vunpack.c.l.b16 %v1747
        %v1784 = vunpack.c.l.b16 %v1748
        %v1785 = vunpack.c.l.b16 %v1749
        %v1786 = vunpack.c.l.b16 %v1750
        %v1787 = vpack.c.b16 %v1772, %v1771
        %v1788 = vpack.c.b16 %v1774, %v1773
        %v1789 = vpack.c.b16 %v1776, %v1775
        %v1790 = vpack.c.b16 %v1778, %v1777
        %v1791 = vpack.c.b16 %v1780, %v1779
        %v1792 = vpack.c.b16 %v1782, %v1781
        %v1793 = vpack.c.b16 %v1784, %v1783
        %v1794 = vpack.c.b16 %v1786, %v1785
        %1803 = vmatpush.bf16.msra.mxu0 %v1794
        %1804 = vmatpush.bf16.msra.mxu0 %v1793
        %1805 = vmatpush.bf16.msra.mxu0 %v1792
        %1806 = vmatpush.bf16.msra.mxu0 %v1791
        %1807 = vmatpush.bf16.msra.mxu0 %v1790
        %1808 = vmatpush.bf16.msra.mxu0 %v1789
        %1809 = vmatpush.bf16.msra.mxu0 %v1788
        %1810 = vmatpush.bf16.msra.mxu0 %v1787
        %1811 = vmatmul.bf16.gmra.mxu0 %v1731
        %v1812 = vpop.f32.mrf.mxu0
        %v1813 = vadd.f32 %v1753, %v1812
        %v1814 = vpop.f32.mrf.mxu0
        %v1815 = vadd.f32 %v1753, %v1814
        %1816 = vmatmul.bf16.gmra.mxu0 %v1732
        %v1817 = vpop.f32.mrf.mxu0
        %v1818 = vadd.f32 %v1753, %v1817
        %v1819 = vpop.f32.mrf.mxu0
        %v1820 = vadd.f32 %v1753, %v1819
        %1821 = vmatmul.bf16.gmra.mxu0 %v1733
        %v1822 = vpop.f32.mrf.mxu0
        %v1823 = vadd.f32 %v1753, %v1822
        %v1824 = vpop.f32.mrf.mxu0
        %v1825 = vadd.f32 %v1753, %v1824
        %1826 = vmatmul.bf16.gmra.mxu0 %v1734
        %v1827 = vpop.f32.mrf.mxu0
        %v1828 = vadd.f32 %v1753, %v1827
        %v1829 = vpop.f32.mrf.mxu0
        %v1830 = vadd.f32 %v1753, %v1829
        %1831 = vdwg.mxu0
        %v1832 = vpack.c.bf16 %v1813, %v1813
        %v1833 = vpack.c.bf16 %v1815, %v1815
        %v1834 = vpack.c.bf16 %v1818, %v1818
        %v1835 = vpack.c.bf16 %v1820, %v1820
        %v1836 = vpack.c.bf16 %v1823, %v1823
        %v1837 = vpack.c.bf16 %v1825, %v1825
        %v1838 = vpack.c.bf16 %v1828, %v1828
        %v1839 = vpack.c.bf16 %v1830, %v1830
        %1840 = vst [vmem:[%s287] sm:$0xf] %v1832
        %1841 = vst [vmem:[%s287 + $0x4] sm:$0xf] %v1833
        %1842 = vst [vmem:[%s287 + $0x8] sm:$0xf] %v1834
        %1843 = vst [vmem:[%s287 + $0xc] sm:$0xf] %v1835
        %1844 = vst [vmem:[%s287 + $0x10] sm:$0xf] %v1836
        %1845 = vst [vmem:[%s287 + $0x14] sm:$0xf] %v1837
        %1846 = vst [vmem:[%s287 + $0x18] sm:$0xf] %v1838
        %1847 = vst [vmem:[%s287 + $0x1c] sm:$0xf] %v1839
        %v1848 = vld [vmem:[%s302] sm:$0xff]
        %v1849 = vld [vmem:[%s302 + $0x8] sm:$0xff]
        %v1850 = vld [vmem:[%s302 + $0x10] sm:$0xff]
        %v1851 = vld [vmem:[%s302 + $0x18] sm:$0xff]
        %v1852 = vld [vmem:[%s302 + $0x20] sm:$0xff]
        %v1853 = vld [vmem:[%s302 + $0x28] sm:$0xff]
        %v1854 = vld [vmem:[%s302 + $0x30] sm:$0xff]
        %v1855 = vld [vmem:[%s302 + $0x38] sm:$0xff]
        %v1856 = vlaneseq
        %v1857 = vand.u32 %v1856, 127
        %vm1858 = vcmp.lt.s32.totalorder %v1857, 3
        %v1859 = vsel %vm1858, 1, 0
        %v1860 = vcvt.s32.f32 %v1859
        %v1861 = vmax.f32 %v1813, 0.0
        %v1862 = vmax.f32 %v1815, 0.0
        %v1863 = vmax.f32 %v1818, 0.0
        %v1864 = vmax.f32 %v1820, 0.0
        %v1865 = vmax.f32 %v1823, 0.0
        %v1866 = vmax.f32 %v1825, 0.0
        %v1867 = vmax.f32 %v1828, 0.0
        %v1868 = vmax.f32 %v1830, 0.0
        %1870 = vset.pattern.permute.xlu0 0
        %1871 = vperm.xlu0 %1870, %v1848
        %v1872 = vpop.permute.xlu0 %1871
        %1875 = vset.pattern.permute.xlu0 0
        %1876 = vperm.xlu0 %1875, %v1849
        %v1877 = vpop.permute.xlu0 %1876
        %1880 = vset.pattern.permute.xlu0 0
        %1881 = vperm.xlu0 %1880, %v1850
        %v1882 = vpop.permute.xlu0 %1881
        %1885 = vset.pattern.permute.xlu0 0
        %1886 = vperm.xlu0 %1885, %v1851
        %v1887 = vpop.permute.xlu0 %1886
        %1890 = vset.pattern.permute.xlu0 0
        %1891 = vperm.xlu0 %1890, %v1852
        %v1892 = vpop.permute.xlu0 %1891
        %1895 = vset.pattern.permute.xlu0 0
        %1896 = vperm.xlu0 %1895, %v1853
        %v1897 = vpop.permute.xlu0 %1896
        %1900 = vset.pattern.permute.xlu0 0
        %1901 = vperm.xlu0 %1900, %v1854
        %v1902 = vpop.permute.xlu0 %1901
        %1905 = vset.pattern.permute.xlu0 0
        %1906 = vperm.xlu0 %1905, %v1855
        %v1907 = vpop.permute.xlu0 %1906
        %v1909 = vmul.f32 %v1813, %v1872
        %v1910 = vmul.f32 %v1815, %v1877
        %v1911 = vmul.f32 %v1818, %v1882
        %v1912 = vmul.f32 %v1820, %v1887
        %v1913 = vmul.f32 %v1823, %v1892
        %v1914 = vmul.f32 %v1825, %v1897
        %v1915 = vmul.f32 %v1828, %v1902
        %v1916 = vmul.f32 %v1830, %v1907
        %v1917 = vsub.f32 %v1861, %v1909
        %v1918 = vsub.f32 %v1862, %v1910
        %v1919 = vsub.f32 %v1863, %v1911
        %v1920 = vsub.f32 %v1864, %v1912
        %v1921 = vsub.f32 %v1865, %v1913
        %v1922 = vsub.f32 %v1866, %v1914
        %v1923 = vsub.f32 %v1867, %v1915
        %v1924 = vsub.f32 %v1868, %v1916
        %v1925 = vand.u32 2147483647, %v1813
        %v1926 = vand.u32 2147483647, %v1815
        %v1927 = vand.u32 2147483647, %v1818
        %v1928 = vand.u32 2147483647, %v1820
        %v1929 = vand.u32 2147483647, %v1823
        %v1930 = vand.u32 2147483647, %v1825
        %v1931 = vand.u32 2147483647, %v1828
        %v1932 = vand.u32 2147483647, %v1830
        %v1933 = vsub.f32 0.0, %v1925
        %v1934 = vsub.f32 0.0, %v1926
        %v1935 = vsub.f32 0.0, %v1927
        %v1936 = vsub.f32 0.0, %v1928
        %v1937 = vsub.f32 0.0, %v1929
        %v1938 = vsub.f32 0.0, %v1930
        %v1939 = vsub.f32 0.0, %v1931
        %v1940 = vsub.f32 0.0, %v1932
        %v1941 = vmul.f32 %v1933, 1.442695
        %v1942 = vpow.pop %v1941
        %v1943 = vmul.f32 %v1934, 1.442695
        %v1944 = vpow.pop %v1943
        %v1945 = vmul.f32 %v1935, 1.442695
        %v1946 = vpow.pop %v1945
        %v1947 = vmul.f32 %v1936, 1.442695
        %v1948 = vpow.pop %v1947
        %v1949 = vmul.f32 %v1937, 1.442695
        %v1950 = vpow.pop %v1949
        %v1951 = vmul.f32 %v1938, 1.442695
        %v1952 = vpow.pop %v1951
        %v1953 = vmul.f32 %v1939, 1.442695
        %v1954 = vpow.pop %v1953
        %v1955 = vmul.f32 %v1940, 1.442695
        %v1956 = vpow.pop %v1955
        %v1957 = vadd.f32 %v1942, 1.0
        %v1958 = vlog2.pop %v1957
        %v1959 = vmul.f32 %v1958, 0.6931472
        %v1960 = vmul.f32 -0.5, %v1942
        %v1961 = vadd.f32 %v1960, 1.0
        %v1962 = vmul.f32 %v1961, %v1942
        %v1963 = vand.u32 2147483647, %v1942
        %vm1964 = vcmp.lt.f32.partialorder %v1963, 0.0004427343
        %v1965 = vsel %vm1964, %v1962, %v1959
        %v1966 = vadd.f32 %v1944, 1.0
        %v1967 = vlog2.pop %v1966
        %v1968 = vmul.f32 %v1967, 0.6931472
        %v1969 = vmul.f32 -0.5, %v1944
        %v1970 = vadd.f32 %v1969, 1.0
        %v1971 = vmul.f32 %v1970, %v1944
        %v1972 = vand.u32 2147483647, %v1944
        %vm1973 = vcmp.lt.f32.partialorder %v1972, 0.0004427343
        %v1974 = vsel %vm1973, %v1971, %v1968
        %v1975 = vadd.f32 %v1946, 1.0
        %v1976 = vlog2.pop %v1975
        %v1977 = vmul.f32 %v1976, 0.6931472
        %v1978 = vmul.f32 -0.5, %v1946
        %v1979 = vadd.f32 %v1978, 1.0
        %v1980 = vmul.f32 %v1979, %v1946
        %v1981 = vand.u32 2147483647, %v1946
        %vm1982 = vcmp.lt.f32.partialorder %v1981, 0.0004427343
        %v1983 = vsel %vm1982, %v1980, %v1977
        %v1984 = vadd.f32 %v1948, 1.0
        %v1985 = vlog2.pop %v1984
        %v1986 = vmul.f32 %v1985, 0.6931472
        %v1987 = vmul.f32 -0.5, %v1948
        %v1988 = vadd.f32 %v1987, 1.0
        %v1989 = vmul.f32 %v1988, %v1948
        %v1990 = vand.u32 2147483647, %v1948
        %vm1991 = vcmp.lt.f32.partialorder %v1990, 0.0004427343
        %v1992 = vsel %vm1991, %v1989, %v1986
        %v1993 = vadd.f32 %v1950, 1.0
        %v1994 = vlog2.pop %v1993
        %v1995 = vmul.f32 %v1994, 0.6931472
        %v1996 = vmul.f32 -0.5, %v1950
        %v1997 = vadd.f32 %v1996, 1.0
        %v1998 = vmul.f32 %v1997, %v1950
        %v1999 = vand.u32 2147483647, %v1950
        %vm2000 = vcmp.lt.f32.partialorder %v1999, 0.0004427343
        %v2001 = vsel %vm2000, %v1998, %v1995
        %v2002 = vadd.f32 %v1952, 1.0
        %v2003 = vlog2.pop %v2002
        %v2004 = vmul.f32 %v2003, 0.6931472
        %v2005 = vmul.f32 -0.5, %v1952
        %v2006 = vadd.f32 %v2005, 1.0
        %v2007 = vmul.f32 %v2006, %v1952
        %v2008 = vand.u32 2147483647, %v1952
        %vm2009 = vcmp.lt.f32.partialorder %v2008, 0.0004427343
        %v2010 = vsel %vm2009, %v2007, %v2004
        %v2011 = vadd.f32 %v1954, 1.0
        %v2012 = vlog2.pop %v2011
        %v2013 = vmul.f32 %v2012, 0.6931472
        %v2014 = vmul.f32 -0.5, %v1954
        %v2015 = vadd.f32 %v2014, 1.0
        %v2016 = vmul.f32 %v2015, %v1954
        %v2017 = vand.u32 2147483647, %v1954
        %vm2018 = vcmp.lt.f32.partialorder %v2017, 0.0004427343
        %v2019 = vsel %vm2018, %v2016, %v2013
        %v2020 = vadd.f32 %v1956, 1.0
        %v2021 = vlog2.pop %v2020
        %v2022 = vmul.f32 %v2021, 0.6931472
        %v2023 = vmul.f32 -0.5, %v1956
        %v2024 = vadd.f32 %v2023, 1.0
        %v2025 = vmul.f32 %v2024, %v1956
        %v2026 = vand.u32 2147483647, %v1956
        %vm2027 = vcmp.lt.f32.partialorder %v2026, 0.0004427343
        %v2028 = vsel %vm2027, %v2025, %v2022
        %v2029 = vadd.f32 %v1917, %v1965
        %v2030 = vadd.f32 %v1918, %v1974
        %v2031 = vadd.f32 %v1919, %v1983
        %v2032 = vadd.f32 %v1920, %v1992
        %v2033 = vadd.f32 %v1921, %v2001
        %v2034 = vadd.f32 %v1922, %v2010
        %v2035 = vadd.f32 %v1923, %v2019
        %v2036 = vadd.f32 %v1924, %v2028
        %v2037 = vmul.f32 %v2029, %v1860
        %v2038 = vmul.f32 %v2030, %v1860
        %v2039 = vmul.f32 %v2031, %v1860
        %v2040 = vmul.f32 %v2032, %v1860
        %v2041 = vmul.f32 %v2033, %v1860
        %v2042 = vmul.f32 %v2034, %v1860
        %v2043 = vmul.f32 %v2035, %v1860
        %v2044 = vmul.f32 %v2036, %v1860
        %v2045 = vadd.f32 %v2037, %v2038
        %v2046 = vadd.f32 %v2045, %v2039
        %v2047 = vadd.f32 %v2046, %v2040
        %v2048 = vadd.f32 %v2047, %v2041
        %v2049 = vadd.f32 %v2048, %v2042
        %v2050 = vadd.f32 %v2049, %v2043
        %v2051 = vadd.f32 %v2050, %v2044
        %2052 = vadd.xlane.f32.xlu0 %v2051
        %v2053 = vpop.xlane.xlu0 %2052
        %v2054 = vrot.slane %v2053, 4
        %v2055 = vadd.f32 %v2053, %v2054
        %v2056 = vrot.slane %v2055, 2
        %v2057 = vadd.f32 %v2055, %v2056
        %v2058 = vrot.slane %v2057, 1
        %v2059 = vadd.f32 %v2057, %v2058
        %s2060 = vtos %v2059
        %v2061 = vstv %s2060
        %v2062 = vadd.f32 %v2061, 0.0
        %vm2063 = vcmask 0
        %2064 = vst.msk [vmem:[%s305] sm:$0x1] %vm2063, %v2062
        %s2065 = sand.u32 %s166, 1
        %s2066 = scalar_lea.sflag [#allocation4], %s2065
        %s2067 = sand.u32 %s166, 1
        %s2068 = smul.addr %s2067, 32
        %s2069 = scalar_lea.vmem [#allocation3], %s2068
        %p2070 = scmp.lt.s32.totalorder %s22, 1
        %s2071 = scalar_select %p2070, %s22, 1
        %s2072 = scalar_lea.vmem %s7, %s2071
        // Predicated region
        $region45: #{inod_rcnn_forward.3} parent=43 // pred_check
          %p2073 = pneg %p176
        $region46: #{inod_rcnn_forward.3} parent=43 // pred_check_branch
          %2075 = sbr.rel (%p2073) target = $region48
        $region47: #{inod_rcnn_forward.3} parent=43 // pred_region
          %2077 = vsyncadd %s2066, 0
          %s2078 = smul.addr %s22, 8
          %s2079 = smul.addr %s2078, 4
          %s2080 = scalar_lea.hbm %s6, %s2079
          %s2081 = sshll.u32 %s2069, 4
          %s2082 = int_to_ptr.vmem [resolvable:$true] %s2081
          %s2083 = sshll.u32 %s2080, 4
          %s2084 = int_to_ptr.hbm [resolvable:$true] %s2083
          %2089 = dma.vmem_to_hbm [thread:$0]  %s2082, 512, %s2084, %s2066, 64, 64, 4
        $region48: #{inod_rcnn_forward.3} parent=43 // pred_fallthru
          _
        // Predicated region
        $region49: #{inod_rcnn_forward.3} parent=43 // pred_check
          %p2090 = pneg %p202
        $region50: #{inod_rcnn_forward.3} parent=43 // pred_check_branch
          %2092 = sbr.rel (%p2090) target = $region52
        $region51: #{inod_rcnn_forward.3} parent=43 // pred_region
          _
        $region52: #{inod_rcnn_forward.3} parent=43 // pred_fallthru
          _
      $region44: #{inod_rcnn_forward.3} parent=5 // pred_fallthru
        _
      %p2093 = scmp.le.s32.totalorder 2, %s17
      // Predicated region
      $region53: #{inod_rcnn_forward.3} parent=5 // pred_check
        %p2094 = pneg %p2093
      $region54: #{inod_rcnn_forward.3} parent=5 // pred_check_branch
        %2096 = sbr.rel (%p2094) target = $region56
      $region55: #{inod_rcnn_forward.3} parent=5 // pred_region
        %s2097 = ssub.s32 %s17, 2
        // Predicated region
        $region57: #{inod_rcnn_forward.3} parent=55 // pred_check
          %p2098 = pneg %p182
        $region58: #{inod_rcnn_forward.3} parent=55 // pred_check_branch
          %2100 = sbr.rel (%p2098) target = $region60
        $region59: #{inod_rcnn_forward.3} parent=55 // pred_region
          %s2101 = sand.u32 %s167, 1
          %s2102 = scalar_lea.sflag [#allocation4], %s2101
          %s2103 = sand.u32 %s167, 1
          %s2104 = smul.addr %s2103, 32
          %s2105 = scalar_lea.vmem [#allocation3], %s2104
          %2107 = dma.done %s2102, 512
        $region60: #{inod_rcnn_forward.3} parent=55 // pred_fallthru
          _
        // Predicated region
        $region61: #{inod_rcnn_forward.3} parent=55 // pred_check
          %p2108 = pneg %p208
        $region62: #{inod_rcnn_forward.3} parent=55 // pred_check_branch
          %2110 = sbr.rel (%p2108) target = $region64
        $region63: #{inod_rcnn_forward.3} parent=55 // pred_region
          %p2111 = scmp.lt.s32.totalorder %s23, 1
          %s2112 = scalar_select %p2111, %s23, 1
          %s2113 = scalar_lea.vmem %s7, %s2112
        $region64: #{inod_rcnn_forward.3} parent=55 // pred_fallthru
          _
      $region56: #{inod_rcnn_forward.3} parent=5 // pred_fallthru
        _
    $region6: #{inod_rcnn_forward.3} parent=1 // loop_footer
      %s21 = sadd.s32 1, %s17
    $region7: #{inod_rcnn_forward.3} parent=1 // loop_footer_branch
      %16 = sbr.rel target = $region3
    $region8: #{inod_rcnn_forward.3} parent=1 // loop_exit
      _
    %2114 = vsyncpa [#allocation4], 1
    %s2115 = scalar_lea.sflag [#allocation4], 1
    %2116 = vsyncpa %s2115, 1

</llo_original>
